<compile_context>
chip_gen: v7x
topology: tpu7x:2x2x1
jax: 0.10.0
libtpu: 0.0.40
codegen_flags: <defaults>
</compile_context>

<pallas_src>
import math
from functools import partial

import jax
import jax.numpy as jnp
from jax import lax
from jax.experimental import pallas as pl
from jax.experimental.pallas import tpu as pltpu


# ----------------------------- config (mirrors `args`) -----------------------------
class Args:
    img_hidden_sz = 32      # embedding width produced by the image encoder
    num_image_embeds = 4    # -> 2x2 adaptive-avg-pool grid (MMBT convention)
    hidden = [64]           # classifier hidden sizes
    dropout = 0.1           # identity at inference
    n_classes = 8


def _round_up(x, m):
    return ((x + m - 1) // m) * m


# --------------------------------- Pallas kernel ------------------------------------
def make_fused_kernel(n_clf_layers, num_embeds):
    """Whole forward for one (modality, batch-block) grid step.

    Ref shapes seen by the kernel (modality / block-index dims squeezed away):
      patches_ref : (Kpad, B_blk*HW)       bf16  im2col patches, batch*spatial on lanes
      pool_ref    : (NE, B_blk*HW, B_blk)  bf16  per-cell averaging selectors
      wenc_ref    : (D, Kpad)              bf16  conv-as-matmul weight (transposed)
      benc_ref    : (D, 1)                 f32
      clf refs    : per layer l -> wT (out_l, in_l) bf16, bT (out_l, 1) f32
                    (layer 0: in_0 = NE*D, flatten already folded into the weight)
      out_ref     : (OUT_PAD, B_blk)       f32
    """
    def kernel(patches_ref, pool_ref, wenc_ref, benc_ref, *rest):
        clf_refs = rest[:2 * n_clf_layers]
        out_ref = rest[2 * n_clf_layers]

        # --- encoder stem: 3x3-conv-as-matmul + bias + ReLU (lane-dense, N = B_blk*HW) ---
        feat = jnp.dot(wenc_ref[...], patches_ref[...],
                       preferred_element_type=jnp.float32)            # (D, B_blk*HW) f32
        feat = jnp.maximum(feat + benc_ref[...], 0.0)                  # bias + ReLU in f32
        feat16 = feat.astype(jnp.bfloat16)

        # --- adaptive avg pool on the MXU: one (D, B_blk) column block per pool cell ---
        parts = [jnp.dot(feat16, pool_ref[n], preferred_element_type=jnp.float32)
                 for n in range(num_embeds)]                           # NE x (D, B_blk)
        x = jnp.concatenate(parts, axis=0)                             # (NE*D, B_blk)

        # --- classifier MLP, transposed (features on sublanes, batch on lanes) ---
        for l in range(n_clf_layers):
            w = clf_refs[2 * l][...]                                   # (out_l, in_l) bf16
            b = clf_refs[2 * l + 1][...]                               # (out_l, 1)    f32
            x = jnp.dot(w, x.astype(jnp.bfloat16),
                        preferred_element_type=jnp.float32) + b        # (out_l, B_blk)
            if l < n_clf_layers - 1:
                x = jnp.maximum(x, 0.0)                                # ReLU (Dropout = id)

        out_ref[...] = x                                               # single merged store
    return kernel


# ----------------------------------- wrappers ---------------------------------------
def im2col_3x3_T(x_nchw, k_pad):
    """NCHW -> (B, Kpad, H*W): 3x3 neighbourhoods (padding=1), patch dim on sublanes."""
    B, C, H, W = x_nchw.shape
    xp = jnp.pad(x_nchw, ((0, 0), (0, 0), (1, 1), (1, 1)))
    cols = [xp[:, :, dh:dh + H, dw:dw + W] for dh in range(3) for dw in range(3)]
    patches = jnp.stack(cols, axis=1).reshape(B, 9 * C, H * W)         # (B, 9C, HW)
    return jnp.pad(patches, ((0, 0), (0, k_pad - 9 * C), (0, 0)))      # (B, Kpad, HW)


def build_pool_sel(H, W, p, b_blk):
    """(NE, b_blk*H*W, b_blk) selectors: sel[n, b*HW+h, b] = 1/cell_size if h in cell n.

    Matches nn.AdaptiveAvgPool2d((p, p)) when H % p == 0 and W % p == 0.
    """
    hw = H * W
    r = jnp.arange(hw)
    hh, ww = r // W, r % W
    ch, cw = H // p, W // p
    cell = (hh // ch) * p + (ww // cw)                                 # (HW,)
    onehot = (cell[None, :] == jnp.arange(p * p)[:, None]).astype(jnp.float32) / float(ch * cw)
    eye = jnp.eye(b_blk, dtype=jnp.float32)
    sel = jnp.einsum('nh,bc->nbhc', onehot, eye).reshape(p * p, b_blk * hw, b_blk)
    return sel.astype(jnp.bfloat16)                                    # 1/64 is exact in bf16


def mml_forward(rgb, depth, params, args, b_blk=8):
    """Full MMLBase forward: one fused pallas_call over (batch blocks, modalities)."""
    D, NE = args.img_hidden_sz, args.num_image_embeds
    p = int(math.isqrt(NE))
    assert p * p == NE, "num_image_embeds must be a perfect square"
    B, C, H, W = rgb.shape
    assert H % p == 0 and W % p == 0, "adaptive pool matrix requires H % p == 0 and W % p == 0"
    HW = H * W

    Kpad = params["w_encT"].shape[-1]
    OUT_PAD = params["clf_w"][-1].shape[1]
    n_layers = len(params["clf_w"])

    b_blk = max(1, min(b_blk, B))
    Bp = _round_up(B, b_blk)
    nB = Bp // b_blk
    L = b_blk * HW                                                      # lane extent per step

    def prep(img):
        pt = im2col_3x3_T(img, Kpad)                                    # (B, Kpad, HW) f32
        pt = jnp.pad(pt, ((0, Bp - B), (0, 0), (0, 0)))
        pt = pt.reshape(nB, b_blk, Kpad, HW).transpose(0, 2, 1, 3).reshape(nB, Kpad, L)
        return pt.astype(jnp.bfloat16)

    patches = jnp.stack([prep(rgb), prep(depth)], axis=0)               # (2, nB, Kpad, L) bf16
    pool_sel = build_pool_sel(H, W, p, b_blk)                           # (NE, L, b_blk)  bf16

    in_specs = [
        pl.BlockSpec((None, None, Kpad, L), lambda i, m: (m, i, 0, 0)),  # patches
        pl.BlockSpec((NE, L, b_blk), lambda i, m: (0, 0, 0)),            # pool selectors
        pl.BlockSpec((None, D, Kpad), lambda i, m: (m, 0, 0)),           # encoder W^T
        pl.BlockSpec((None, D, 1), lambda i, m: (m, 0, 0)),              # encoder bias
    ]
    clf_args = []
    for w, b in zip(params["clf_w"], params["clf_b"]):
        in_specs.append(pl.BlockSpec((None,) + w.shape[1:], lambda i, m: (m, 0, 0)))
        in_specs.append(pl.BlockSpec((None,) + b.shape[1:], lambda i, m: (m, 0, 0)))
        clf_args += [w, b]

    out = pl.pallas_call(
        make_fused_kernel(n_layers, NE),
        out_shape=jax.ShapeDtypeStruct((2, nB, OUT_PAD, b_blk), jnp.float32),
        grid=(nB, 2),                                                    # batch blocks x modality
        in_specs=in_specs,
        out_specs=pl.BlockSpec((None, None, OUT_PAD, b_blk), lambda i, m: (m, i, 0, 0)),
        compiler_params=pltpu.CompilerParams(
            dimension_semantics=("parallel", "parallel")),               # >=2 steps -> v7x cores
    )(patches, pool_sel, params["w_encT"], params["b_enc"], *clf_args)

    # (2, nB, OUT_PAD, b_blk) -> (2, Bp, OUT_PAD); slice padding + class padding away.
    out = jnp.transpose(out, (0, 1, 3, 2)).reshape(2, Bp, OUT_PAD)
    nc = args.n_classes
    rgb_out = out[0, :B, :nc]
    depth_out = out[1, :B, :nc]
    fused = (depth_out + rgb_out) * 0.5                                  # tiny wrapper op
    return fused, rgb_out, depth_out


# ------------------------------- pure-JAX reference ----------------------------------
def reference_forward(rgb, depth, params, args):
    """Same math in plain JAX (f32 HIGHEST), mirroring the kernel's bf16 storage/casts."""
    D, NE = args.img_hidden_sz, args.num_image_embeds
    p = int(math.isqrt(NE))
    B, C, H, W = rgb.shape
    Kpad = params["w_encT"].shape[-1]
    nc = args.n_classes
    hp = lax.Precision.HIGHEST
    f32 = jnp.float32

    def one_modality(img, m):
        patches = im2col_3x3_T(img, Kpad).astype(jnp.bfloat16).astype(f32)   # (B, Kpad, HW)
        wT = params["w_encT"][m].astype(f32)                                 # (D, Kpad)
        feat = jnp.einsum('dk,bkh->bdh', wT, patches, precision=hp) + params["b_enc"][m][None]
        feat = jnp.maximum(feat, 0.0)
        feat = feat.astype(jnp.bfloat16).astype(f32)                         # mirror kernel cast
        fmap = feat.reshape(B, D, H, W)
        ch, cw = H // p, W // p
        pooled = fmap.reshape(B, D, p, ch, p, cw).mean(axis=(3, 5))          # (B, D, p, p)
        x = pooled.transpose(0, 2, 3, 1).reshape(B, NE * D)                  # flatten n-major
        for l, (wT_l, bT_l) in enumerate(zip(params["clf_w"], params["clf_b"])):
            x = x.astype(jnp.bfloat16).astype(f32)                           # mirror kernel cast
            x = jnp.einsum('bi,oi->bo', x, wT_l[m].astype(f32), precision=hp) + bT_l[m][:, 0]
            if l < len(params["clf_w"]) - 1:
                x = jnp.maximum(x, 0.0)
        return x[:, :nc]

    rgb_out = one_modality(rgb, 0)
    depth_out = one_modality(depth, 1)
    return (depth_out + rgb_out) * 0.5, rgb_out, depth_out


# ------------------------------ deterministic init -----------------------------------
def init_params(key, args, in_channels=3):
    """Kernel-layout parameters: bf16 transposed weights, f32 column biases."""
    D, NE = args.img_hidden_sz, args.num_image_embeds
    K = 9 * in_channels                          # real 3x3xC patch width (27)
    Kpad = _round_up(K, 8)                       # sublane-aligned patch dim (32)
    OUT_PAD = _round_up(args.n_classes, 128)     # lane-dense final output width

    keys = jax.random.split(key, 4)

    def linear(k, fan_in, fan_out):
        kw, kb = jax.random.split(k)
        bound = 1.0 / math.sqrt(fan_in)
        w = jax.random.uniform(kw, (fan_in, fan_out), jnp.float32, -bound, bound)
        b = jax.random.uniform(kb, (fan_out,), jnp.float32, -bound, bound)
        return w, b

    def enc(k):
        w, b = linear(k, K, D)                                       # (K, D), (D,)
        wT = jnp.pad(w.T, ((0, 0), (0, Kpad - K)))                   # (D, Kpad): padded cols 0
        return wT.astype(jnp.bfloat16), b.reshape(D, 1)

    w_rgb, b_rgb = enc(keys[0])
    w_dep, b_dep = enc(keys[1])
    w_encT = jnp.stack([w_rgb, w_dep])                               # (2, D, Kpad) bf16
    b_enc = jnp.stack([b_rgb, b_dep])                                # (2, D, 1)    f32

    def clf(kbase):
        dims = [D * NE] + list(args.hidden) + [args.n_classes]
        ks = jax.random.split(kbase, len(dims) - 1)
        ws, bs = [], []
        for i in range(len(dims) - 1):
            w, b = linear(ks[i], dims[i], dims[i + 1])
            wT, bT = w.T, b.reshape(-1, 1)                           # (out, in), (out, 1)
            if i == len(dims) - 2:                                   # final layer: pad -> 128
                wT = jnp.pad(wT, ((0, OUT_PAD - dims[i + 1]), (0, 0)))
                bT = jnp.pad(bT, ((0, OUT_PAD - dims[i + 1]), (0, 0)))
            ws.append(wT.astype(jnp.bfloat16))
            bs.append(bT)
        return ws, bs

    ws_r, bs_r = clf(keys[2])
    ws_d, bs_d = clf(keys[3])
    clf_w = [jnp.stack([a, b]) for a, b in zip(ws_r, ws_d)]          # layer 0: (2, h0, NE*D)
    clf_b = [jnp.stack([a, b]) for a, b in zip(bs_r, bs_d)]

    return dict(w_encT=w_encT, b_enc=b_enc, clf_w=clf_w, clf_b=clf_b)


# ------------------------------------- main -------------------------------------------
if __name__ == "__main__":
    args = Args()
    key = jax.random.PRNGKey(0)
    k_rgb, k_depth, k_params = jax.random.split(key, 3)

    # PyTorch-style NCHW inputs.
    rgb = jax.random.normal(k_rgb, (2, 3, 16, 16), jnp.float32)
    depth = jax.random.normal(k_depth, (2, 3, 16, 16), jnp.float32)
    params = init_params(k_params, args)

    fwd = jax.jit(partial(mml_forward, args=args))
    fused, rgb_out, depth_out = jax.block_until_ready(fwd(rgb, depth, params))

    assert fused.shape == (2, args.n_classes)
    assert rgb_out.shape == (2, args.n_classes)
    assert depth_out.shape == (2, args.n_classes)

    # Numerical check against a pure-JAX reference of the same computation.
    ref_fused, ref_rgb, ref_depth = reference_forward(rgb, depth, params, args)
    for got, want in ((fused, ref_fused), (rgb_out, ref_rgb), (depth_out, ref_depth)):
        assert jnp.allclose(got, want, atol=2e-3, rtol=2e-3), \
            float(jnp.max(jnp.abs(got - want)))

    print("KERNEL_OK")
</pallas_src>

<mosaic_0001>
module attributes {stable_mosaic.version = 11 : i64} {
  func.func @kernel(%arg0: i32, %arg1: i32, %arg2: memref<1x1x32x512xbf16, #tpu.memory_space<vmem>>, %arg3: memref<4x512x2xbf16, #tpu.memory_space<vmem>>, %arg4: memref<1x32x32xbf16, #tpu.memory_space<vmem>>, %arg5: memref<1x32x1xf32, #tpu.memory_space<vmem>>, %arg6: memref<1x64x128xbf16, #tpu.memory_space<vmem>>, %arg7: memref<1x64x1xf32, #tpu.memory_space<vmem>>, %arg8: memref<1x128x64xbf16, #tpu.memory_space<vmem>>, %arg9: memref<1x128x1xf32, #tpu.memory_space<vmem>>, %arg10: memref<1x1x128x2xf32, #tpu.memory_space<vmem>>) attributes {dimension_semantics = [#tpu.dimension_semantics<parallel>, #tpu.dimension_semantics<parallel>], iteration_bounds = array<i64: 1, 2>, scalar_prefetch = 0 : i64, scratch_operands = 0 : i64, tpu.core_type = #tpu.core_type<tc>, window_params = [{transform_indices = @transform_0, window_bounds = array<i64: 1, 1, 32, 512>}, {pipeline_mode = #tpu.pipeline_mode<synchronous>, transform_indices = @transform_1, window_bounds = array<i64: 4, 512, 2>}, {transform_indices = @transform_2, window_bounds = array<i64: 1, 32, 32>}, {transform_indices = @transform_3, window_bounds = array<i64: 1, 32, 1>}, {transform_indices = @transform_4, window_bounds = array<i64: 1, 64, 128>}, {transform_indices = @transform_5, window_bounds = array<i64: 1, 64, 1>}, {transform_indices = @transform_6, window_bounds = array<i64: 1, 128, 64>}, {transform_indices = @transform_7, window_bounds = array<i64: 1, 128, 1>}, {transform_indices = @transform_8, window_bounds = array<i64: 1, 1, 128, 2>}]} {
    %c0 = arith.constant 0 : index
    %c0_0 = arith.constant 0 : index
    %c0_1 = arith.constant 0 : index
    %0 = vector.load %arg4[%c0, %c0_0, %c0_1] : memref<1x32x32xbf16, #tpu.memory_space<vmem>>, vector<1x32x32xbf16>
    %1 = vector.shape_cast %0 : vector<1x32x32xbf16> to vector<32x32xbf16>
    %c0_2 = arith.constant 0 : index
    %c0_3 = arith.constant 0 : index
    %c0_4 = arith.constant 0 : index
    %c0_5 = arith.constant 0 : index
    %2 = vector.load %arg2[%c0_2, %c0_3, %c0_4, %c0_5] : memref<1x1x32x512xbf16, #tpu.memory_space<vmem>>, vector<1x1x32x512xbf16>
    %3 = vector.shape_cast %2 : vector<1x1x32x512xbf16> to vector<32x512xbf16>
    %cst = arith.constant dense<0.000000e+00> : vector<32x512xf32>
    %4 = tpu.matmul %1, %3, %cst {dimension_numbers = #tpu.dot_dimension_numbers<[1], [0], [0], [1], [0, 0, 1, 1], [], []>} : vector<32x32xbf16>, vector<32x512xbf16>, vector<32x512xf32> -> vector<32x512xf32>
    %c0_6 = arith.constant 0 : index
    %c0_7 = arith.constant 0 : index
    %c0_8 = arith.constant 0 : index
    %5 = vector.load %arg5[%c0_6, %c0_7, %c0_8] : memref<1x32x1xf32, #tpu.memory_space<vmem>>, vector<1x32x1xf32>
    %6 = vector.shape_cast %5 : vector<1x32x1xf32> to vector<32x1xf32>
    %7 = vector.broadcast %6 : vector<32x1xf32> to vector<32x512xf32>
    %8 = arith.addf %4, %7 : vector<32x512xf32>
    %cst_9 = arith.constant 0.000000e+00 : f32
    %9 = vector.broadcast %cst_9 : f32 to vector<32x512xf32>
    %10 = arith.maximumf %8, %9 : vector<32x512xf32>
    %11 = arith.truncf %10 : vector<32x512xf32> to vector<32x512xbf16>
    %c0_10 = arith.constant 0 : index
    %c0_11 = arith.constant 0 : index
    %c0_12 = arith.constant 0 : index
    %12 = vector.load %arg3[%c0_10, %c0_11, %c0_12] : memref<4x512x2xbf16, #tpu.memory_space<vmem>>, vector<1x512x2xbf16>
    %13 = vector.shape_cast %12 : vector<1x512x2xbf16> to vector<512x2xbf16>
    %cst_13 = arith.constant dense<0.000000e+00> : vector<32x2xf32>
    %14 = tpu.matmul %11, %13, %cst_13 {dimension_numbers = #tpu.dot_dimension_numbers<[1], [0], [0], [1], [0, 0, 1, 1], [], []>} : vector<32x512xbf16>, vector<512x2xbf16>, vector<32x2xf32> -> vector<32x2xf32>
    %c1 = arith.constant 1 : index
    %c0_14 = arith.constant 0 : index
    %c0_15 = arith.constant 0 : index
    %15 = vector.load %arg3[%c1, %c0_14, %c0_15] : memref<4x512x2xbf16, #tpu.memory_space<vmem>>, vector<1x512x2xbf16>
    %16 = vector.shape_cast %15 : vector<1x512x2xbf16> to vector<512x2xbf16>
    %cst_16 = arith.constant dense<0.000000e+00> : vector<32x2xf32>
    %17 = tpu.matmul %11, %16, %cst_16 {dimension_numbers = #tpu.dot_dimension_numbers<[1], [0], [0], [1], [0, 0, 1, 1], [], []>} : vector<32x512xbf16>, vector<512x2xbf16>, vector<32x2xf32> -> vector<32x2xf32>
    %c2 = arith.constant 2 : index
    %c0_17 = arith.constant 0 : index
    %c0_18 = arith.constant 0 : index
    %18 = vector.load %arg3[%c2, %c0_17, %c0_18] : memref<4x512x2xbf16, #tpu.memory_space<vmem>>, vector<1x512x2xbf16>
    %19 = vector.shape_cast %18 : vector<1x512x2xbf16> to vector<512x2xbf16>
    %cst_19 = arith.constant dense<0.000000e+00> : vector<32x2xf32>
    %20 = tpu.matmul %11, %19, %cst_19 {dimension_numbers = #tpu.dot_dimension_numbers<[1], [0], [0], [1], [0, 0, 1, 1], [], []>} : vector<32x512xbf16>, vector<512x2xbf16>, vector<32x2xf32> -> vector<32x2xf32>
    %c3 = arith.constant 3 : index
    %c0_20 = arith.constant 0 : index
    %c0_21 = arith.constant 0 : index
    %21 = vector.load %arg3[%c3, %c0_20, %c0_21] : memref<4x512x2xbf16, #tpu.memory_space<vmem>>, vector<1x512x2xbf16>
    %22 = vector.shape_cast %21 : vector<1x512x2xbf16> to vector<512x2xbf16>
    %cst_22 = arith.constant dense<0.000000e+00> : vector<32x2xf32>
    %23 = tpu.matmul %11, %22, %cst_22 {dimension_numbers = #tpu.dot_dimension_numbers<[1], [0], [0], [1], [0, 0, 1, 1], [], []>} : vector<32x512xbf16>, vector<512x2xbf16>, vector<32x2xf32> -> vector<32x2xf32>
    %24 = tpu.concatenate %14, %17, %20, %23 in 0 : vector<32x2xf32>, vector<32x2xf32>, vector<32x2xf32>, vector<32x2xf32> -> vector<128x2xf32>
    %c0_23 = arith.constant 0 : index
    %c0_24 = arith.constant 0 : index
    %c0_25 = arith.constant 0 : index
    %25 = vector.load %arg6[%c0_23, %c0_24, %c0_25] : memref<1x64x128xbf16, #tpu.memory_space<vmem>>, vector<1x64x128xbf16>
    %26 = vector.shape_cast %25 : vector<1x64x128xbf16> to vector<64x128xbf16>
    %c0_26 = arith.constant 0 : index
    %c0_27 = arith.constant 0 : index
    %c0_28 = arith.constant 0 : index
    %27 = vector.load %arg7[%c0_26, %c0_27, %c0_28] : memref<1x64x1xf32, #tpu.memory_space<vmem>>, vector<1x64x1xf32>
    %28 = vector.shape_cast %27 : vector<1x64x1xf32> to vector<64x1xf32>
    %29 = arith.truncf %24 : vector<128x2xf32> to vector<128x2xbf16>
    %cst_29 = arith.constant dense<0.000000e+00> : vector<64x2xf32>
    %30 = tpu.matmul %26, %29, %cst_29 {dimension_numbers = #tpu.dot_dimension_numbers<[1], [0], [0], [1], [0, 0, 1, 1], [], []>} : vector<64x128xbf16>, vector<128x2xbf16>, vector<64x2xf32> -> vector<64x2xf32>
    %31 = vector.broadcast %28 : vector<64x1xf32> to vector<64x2xf32>
    %32 = arith.addf %30, %31 : vector<64x2xf32>
    %cst_30 = arith.constant 0.000000e+00 : f32
    %33 = vector.broadcast %cst_30 : f32 to vector<64x2xf32>
    %34 = arith.maximumf %32, %33 : vector<64x2xf32>
    %c0_31 = arith.constant 0 : index
    %c0_32 = arith.constant 0 : index
    %c0_33 = arith.constant 0 : index
    %35 = vector.load %arg8[%c0_31, %c0_32, %c0_33] : memref<1x128x64xbf16, #tpu.memory_space<vmem>>, vector<1x128x64xbf16>
    %36 = vector.shape_cast %35 : vector<1x128x64xbf16> to vector<128x64xbf16>
    %c0_34 = arith.constant 0 : index
    %c0_35 = arith.constant 0 : index
    %c0_36 = arith.constant 0 : index
    %37 = vector.load %arg9[%c0_34, %c0_35, %c0_36] : memref<1x128x1xf32, #tpu.memory_space<vmem>>, vector<1x128x1xf32>
    %38 = vector.shape_cast %37 : vector<1x128x1xf32> to vector<128x1xf32>
    %39 = arith.truncf %34 : vector<64x2xf32> to vector<64x2xbf16>
    %cst_37 = arith.constant dense<0.000000e+00> : vector<128x2xf32>
    %40 = tpu.matmul %36, %39, %cst_37 {dimension_numbers = #tpu.dot_dimension_numbers<[1], [0], [0], [1], [0, 0, 1, 1], [], []>} : vector<128x64xbf16>, vector<64x2xbf16>, vector<128x2xf32> -> vector<128x2xf32>
    %41 = vector.broadcast %38 : vector<128x1xf32> to vector<128x2xf32>
    %42 = arith.addf %40, %41 : vector<128x2xf32>
    %c0_38 = arith.constant 0 : index
    %c0_39 = arith.constant 0 : index
    %c0_40 = arith.constant 0 : index
    %c0_41 = arith.constant 0 : index
    %43 = vector.load %arg10[%c0_38, %c0_39, %c0_40, %c0_41] : memref<1x1x128x2xf32, #tpu.memory_space<vmem>>, vector<1x1x128x2xf32>
    %44 = vector.shape_cast %43 : vector<1x1x128x2xf32> to vector<128x2xf32>
    %45 = vector.shape_cast %42 : vector<128x2xf32> to vector<1x1x128x2xf32>
    tpu.vector_store %arg10[%c0_38, %c0_39, %c0_40, %c0_41], %45 {strides = array<i32>} : memref<1x1x128x2xf32, #tpu.memory_space<vmem>>, vector<1x1x128x2xf32>,
    return
  }
  func.func @transform_0(%arg0: i32, %arg1: i32) -> (i32, i32, i32, i32) {
    %c0_i32 = arith.constant 0 : i32
    %c0_i32_0 = arith.constant 0 : i32
    %c0_i32_1 = arith.constant 0 : i32
    return %arg1, %arg0, %c0_i32, %c0_i32_0 : i32, i32, i32, i32
  }
  func.func @transform_1(%arg0: i32, %arg1: i32) -> (i32, i32, i32) {
    %c0_i32 = arith.constant 0 : i32
    %c0_i32_0 = arith.constant 0 : i32
    %c0_i32_1 = arith.constant 0 : i32
    %c0_i32_2 = arith.constant 0 : i32
    return %c0_i32, %c0_i32_0, %c0_i32_1 : i32, i32, i32
  }
  func.func @transform_2(%arg0: i32, %arg1: i32) -> (i32, i32, i32) {
    %c0_i32 = arith.constant 0 : i32
    %c0_i32_0 = arith.constant 0 : i32
    %c0_i32_1 = arith.constant 0 : i32
    return %arg1, %c0_i32, %c0_i32_0 : i32, i32, i32
  }
  func.func @transform_3(%arg0: i32, %arg1: i32) -> (i32, i32, i32) {
    %c0_i32 = arith.constant 0 : i32
    %c0_i32_0 = arith.constant 0 : i32
    %c0_i32_1 = arith.constant 0 : i32
    return %arg1, %c0_i32, %c0_i32_0 : i32, i32, i32
  }
  func.func @transform_4(%arg0: i32, %arg1: i32) -> (i32, i32, i32) {
    %c0_i32 = arith.constant 0 : i32
    %c0_i32_0 = arith.constant 0 : i32
    %c0_i32_1 = arith.constant 0 : i32
    return %arg1, %c0_i32, %c0_i32_0 : i32, i32, i32
  }
  func.func @transform_5(%arg0: i32, %arg1: i32) -> (i32, i32, i32) {
    %c0_i32 = arith.constant 0 : i32
    %c0_i32_0 = arith.constant 0 : i32
    %c0_i32_1 = arith.constant 0 : i32
    return %arg1, %c0_i32, %c0_i32_0 : i32, i32, i32
  }
  func.func @transform_6(%arg0: i32, %arg1: i32) -> (i32, i32, i32) {
    %c0_i32 = arith.constant 0 : i32
    %c0_i32_0 = arith.constant 0 : i32
    %c0_i32_1 = arith.constant 0 : i32
    return %arg1, %c0_i32, %c0_i32_0 : i32, i32, i32
  }
  func.func @transform_7(%arg0: i32, %arg1: i32) -> (i32, i32, i32) {
    %c0_i32 = arith.constant 0 : i32
    %c0_i32_0 = arith.constant 0 : i32
    %c0_i32_1 = arith.constant 0 : i32
    return %arg1, %c0_i32, %c0_i32_0 : i32, i32, i32
  }
  func.func @transform_8(%arg0: i32, %arg1: i32) -> (i32, i32, i32, i32) {
    %c0_i32 = arith.constant 0 : i32
    %c0_i32_0 = arith.constant 0 : i32
    %c0_i32_1 = arith.constant 0 : i32
    return %arg1, %arg0, %c0_i32, %c0_i32_0 : i32, i32, i32, i32
  }
}

</mosaic_0001>

<llo_original>
// kernel: mml_forward.1
$region0: #{mml_forward.1}
  #allocation0 [shape = 'u32[]', space=smem, size = 0x4, offset = 0x4, fixed_abs, tag = 'smem constant byte address 0x4 - core index']
  #allocation1 [shape = 'u32[144,128]{1,0:T(1,128)}', space=vmem, size = 0x12000, scoped, tag = 'internal scratch']
  %s0 = inlined_call_operand.vmem [shape: bf16[2,1,32,512], index: 0, kind: input, shape index: {}]
  %s1 = inlined_call_operand.vmem [shape: bf16[4,512,2], index: 1, kind: input, shape index: {}]
  %s2 = inlined_call_operand.vmem [shape: bf16[2,32,32], index: 2, kind: input, shape index: {}]
  %s3 = inlined_call_operand.vmem [shape: f32[2,32,1], index: 3, kind: input, shape index: {}]
  %s4 = inlined_call_operand.vmem [shape: bf16[2,64,128], index: 4, kind: input, shape index: {}]
  %s5 = inlined_call_operand.vmem [shape: f32[2,64,1], index: 5, kind: input, shape index: {}]
  %s6 = inlined_call_operand.vmem [shape: bf16[2,128,64], index: 6, kind: input, shape index: {}]
  %s7 = inlined_call_operand.vmem [shape: f32[2,128,1], index: 7, kind: input, shape index: {}]
  %s8 = inlined_call_operand.vmem [shape: f32[2,1,128,2], index: 8, kind: output, shape index: {}]
  %s9 = sld [smem:[#allocation0]]
  $region65: #{mml_forward.1} parent=0
    _
  %s11 = ssub.s32 1, %s9
  %s12 = scalar_select 0, %s11, %s9
  loop: start=0, step=1, limit=4
  $region2: #{mml_forward.1} parent=0 // loop_pre_header
    _
  $region3: #{mml_forward.1} parent=0 // loop_header
    %s14 = sphi 0, %s18
    %p15 = scmp.ge.s32.totalorder %s14, 4
    %s21 = sphi 0, %s33
    %s22 = sphi 0, %s29
    %s23 = sphi 0, %s21
    %s24 = sphi 0, %s22
    %s25 = sphi 0, %s23
    %s26 = sphi 0, %s24
    %s38 = sphi 0, %s40
    %s41 = sphi 0, %s38
    %s42 = sphi 0, %s41
    %s58 = sphi 0, %s42
    %s62 = sphi 0, %s62
    %s64 = sphi 0, %s62
    %s65 = sphi 0, %s64
    %s79 = sphi 0, %s65
    %s85 = sphi 0, %s87
    %s88 = sphi 0, %s85
    %s89 = sphi 0, %s88
    %s105 = sphi 0, %s89
    %s111 = sphi 0, %s113
    %s114 = sphi 0, %s111
    %s115 = sphi 0, %s114
    %s131 = sphi 0, %s115
    %s137 = sphi 0, %s139
    %s140 = sphi 0, %s137
    %s141 = sphi 0, %s140
    %s157 = sphi 0, %s141
    %s163 = sphi 0, %s165
    %s166 = sphi 0, %s163
    %s167 = sphi 0, %s166
    %s183 = sphi 0, %s167
    %s189 = sphi 0, %s191
    %s192 = sphi 0, %s189
    %s193 = sphi 0, %s192
    %s209 = sphi 0, %s193
    %s215 = sphi 0, %s217
    %s218 = sphi 0, %s215
    %s219 = sphi 0, %s218
    %s235 = sphi 0, %s219
    %s243 = sphi 0, %s245
    %s246 = sphi 0, %s243
    %s247 = sphi 0, %s246
    %s263 = sphi 0, %s247
  $region4: #{mml_forward.1} parent=0 // loop_header_branch
    %17 = sbr.rel (%p15) target = $region8
  $region5: #{mml_forward.1} parent=0 // loop_body
    %s19 = ssub.s32 %s14, 1
    %s20 = ssub.s32 %s14, 2
    %s27 = sadd.s32 1, %s22
    %p28 = scmp.ge.s32.totalorder %s27, 2
    %s29 = scalar_select %p28, 0, %s27
    %s30 = sadd.s32 1, %s21
    %s31 = scalar_select %p28, %s30, %s21
    %p32 = scmp.ge.s32.totalorder %s31, 1
    %s33 = scalar_select %p32, 0, %s31
    %s34 = ssub.s32 %s22, %s29
    %s35 = ssub.s32 %s21, %s33
    %s36 = sor.u32 %s34, %s35
    %p37 = scmp.eq.s32.totalorder %s36, 0
    %s39 = sadd.s32 %s38, 1
    %s40 = scalar_select %p37, %s38, %s39
    %p43 = pneg %p37
    %p44 = scmp.eq.s32.totalorder %s14, 1
    %p45 = por %p43, %p44
    %p46 = scmp.ne.s32.totalorder %s38, %s41
    %p47 = scmp.eq.s32.totalorder %s14, 0
    %p48 = por %p46, %p47
    %p49 = scmp.ne.s32.totalorder %s38, %s41
    %p50 = scmp.eq.s32.totalorder %s19, 1
    %p51 = por %p49, %p50
    %p52 = scmp.ne.s32.totalorder %s41, %s42
    %p53 = scmp.eq.s32.totalorder %s19, 0
    %p54 = por %p52, %p53
    %p55 = scmp.ne.s32.totalorder %s41, %s42
    %p56 = scmp.eq.s32.totalorder %s20, 1
    %p57 = por %p55, %p56
    %p59 = scmp.ne.s32.totalorder %s42, %s58
    %p60 = scmp.eq.s32.totalorder %s20, 0
    %p61 = por %p59, %p60
    %s63 = sadd.s32 %s62, 1
    %p66 = scmp.eq.s32.totalorder %s14, 1
    %p67 = scmp.ne.s32.totalorder %s62, %s64
    %p68 = scmp.eq.s32.totalorder %s14, 0
    %p69 = por %p67, %p68
    %p70 = scmp.ne.s32.totalorder %s62, %s64
    %p71 = scmp.eq.s32.totalorder %s19, 1
    %p72 = por %p70, %p71
    %p73 = scmp.ne.s32.totalorder %s64, %s65
    %p74 = scmp.eq.s32.totalorder %s19, 0
    %p75 = por %p73, %p74
    %p76 = scmp.ne.s32.totalorder %s64, %s65
    %p77 = scmp.eq.s32.totalorder %s20, 1
    %p78 = por %p76, %p77
    %p80 = scmp.ne.s32.totalorder %s65, %s79
    %p81 = scmp.eq.s32.totalorder %s20, 0
    %p82 = por %p80, %p81
    %s83 = ssub.s32 %s22, %s29
    %p84 = scmp.eq.s32.totalorder %s83, 0
    %s86 = sadd.s32 %s85, 1
    %s87 = scalar_select %p84, %s85, %s86
    %p90 = pneg %p84
    %p91 = scmp.eq.s32.totalorder %s14, 1
    %p92 = por %p90, %p91
    %p93 = scmp.ne.s32.totalorder %s85, %s88
    %p94 = scmp.eq.s32.totalorder %s14, 0
    %p95 = por %p93, %p94
    %p96 = scmp.ne.s32.totalorder %s85, %s88
    %p97 = scmp.eq.s32.totalorder %s19, 1
    %p98 = por %p96, %p97
    %p99 = scmp.ne.s32.totalorder %s88, %s89
    %p100 = scmp.eq.s32.totalorder %s19, 0
    %p101 = por %p99, %p100
    %p102 = scmp.ne.s32.totalorder %s88, %s89
    %p103 = scmp.eq.s32.totalorder %s20, 1
    %p104 = por %p102, %p103
    %p106 = scmp.ne.s32.totalorder %s89, %s105
    %p107 = scmp.eq.s32.totalorder %s20, 0
    %p108 = por %p106, %p107
    %s109 = ssub.s32 %s22, %s29
    %p110 = scmp.eq.s32.totalorder %s109, 0
    %s112 = sadd.s32 %s111, 1
    %s113 = scalar_select %p110, %s111, %s112
    %p116 = pneg %p110
    %p117 = scmp.eq.s32.totalorder %s14, 1
    %p118 = por %p116, %p117
    %p119 = scmp.ne.s32.totalorder %s111, %s114
    %p120 = scmp.eq.s32.totalorder %s14, 0
    %p121 = por %p119, %p120
    %p122 = scmp.ne.s32.totalorder %s111, %s114
    %p123 = scmp.eq.s32.totalorder %s19, 1
    %p124 = por %p122, %p123
    %p125 = scmp.ne.s32.totalorder %s114, %s115
    %p126 = scmp.eq.s32.totalorder %s19, 0
    %p127 = por %p125, %p126
    %p128 = scmp.ne.s32.totalorder %s114, %s115
    %p129 = scmp.eq.s32.totalorder %s20, 1
    %p130 = por %p128, %p129
    %p132 = scmp.ne.s32.totalorder %s115, %s131
    %p133 = scmp.eq.s32.totalorder %s20, 0
    %p134 = por %p132, %p133
    %s135 = ssub.s32 %s22, %s29
    %p136 = scmp.eq.s32.totalorder %s135, 0
    %s138 = sadd.s32 %s137, 1
    %s139 = scalar_select %p136, %s137, %s138
    %p142 = pneg %p136
    %p143 = scmp.eq.s32.totalorder %s14, 1
    %p144 = por %p142, %p143
    %p145 = scmp.ne.s32.totalorder %s137, %s140
    %p146 = scmp.eq.s32.totalorder %s14, 0
    %p147 = por %p145, %p146
    %p148 = scmp.ne.s32.totalorder %s137, %s140
    %p149 = scmp.eq.s32.totalorder %s19, 1
    %p150 = por %p148, %p149
    %p151 = scmp.ne.s32.totalorder %s140, %s141
    %p152 = scmp.eq.s32.totalorder %s19, 0
    %p153 = por %p151, %p152
    %p154 = scmp.ne.s32.totalorder %s140, %s141
    %p155 = scmp.eq.s32.totalorder %s20, 1
    %p156 = por %p154, %p155
    %p158 = scmp.ne.s32.totalorder %s141, %s157
    %p159 = scmp.eq.s32.totalorder %s20, 0
    %p160 = por %p158, %p159
    %s161 = ssub.s32 %s22, %s29
    %p162 = scmp.eq.s32.totalorder %s161, 0
    %s164 = sadd.s32 %s163, 1
    %s165 = scalar_select %p162, %s163, %s164
    %p168 = pneg %p162
    %p169 = scmp.eq.s32.totalorder %s14, 1
    %p170 = por %p168, %p169
    %p171 = scmp.ne.s32.totalorder %s163, %s166
    %p172 = scmp.eq.s32.totalorder %s14, 0
    %p173 = por %p171, %p172
    %p174 = scmp.ne.s32.totalorder %s163, %s166
    %p175 = scmp.eq.s32.totalorder %s19, 1
    %p176 = por %p174, %p175
    %p177 = scmp.ne.s32.totalorder %s166, %s167
    %p178 = scmp.eq.s32.totalorder %s19, 0
    %p179 = por %p177, %p178
    %p180 = scmp.ne.s32.totalorder %s166, %s167
    %p181 = scmp.eq.s32.totalorder %s20, 1
    %p182 = por %p180, %p181
    %p184 = scmp.ne.s32.totalorder %s167, %s183
    %p185 = scmp.eq.s32.totalorder %s20, 0
    %p186 = por %p184, %p185
    %s187 = ssub.s32 %s22, %s29
    %p188 = scmp.eq.s32.totalorder %s187, 0
    %s190 = sadd.s32 %s189, 1
    %s191 = scalar_select %p188, %s189, %s190
    %p194 = pneg %p188
    %p195 = scmp.eq.s32.totalorder %s14, 1
    %p196 = por %p194, %p195
    %p197 = scmp.ne.s32.totalorder %s189, %s192
    %p198 = scmp.eq.s32.totalorder %s14, 0
    %p199 = por %p197, %p198
    %p200 = scmp.ne.s32.totalorder %s189, %s192
    %p201 = scmp.eq.s32.totalorder %s19, 1
    %p202 = por %p200, %p201
    %p203 = scmp.ne.s32.totalorder %s192, %s193
    %p204 = scmp.eq.s32.totalorder %s19, 0
    %p205 = por %p203, %p204
    %p206 = scmp.ne.s32.totalorder %s192, %s193
    %p207 = scmp.eq.s32.totalorder %s20, 1
    %p208 = por %p206, %p207
    %p210 = scmp.ne.s32.totalorder %s193, %s209
    %p211 = scmp.eq.s32.totalorder %s20, 0
    %p212 = por %p210, %p211
    %s213 = ssub.s32 %s22, %s29
    %p214 = scmp.eq.s32.totalorder %s213, 0
    %s216 = sadd.s32 %s215, 1
    %s217 = scalar_select %p214, %s215, %s216
    %p220 = pneg %p214
    %p221 = scmp.eq.s32.totalorder %s14, 1
    %p222 = por %p220, %p221
    %p223 = scmp.ne.s32.totalorder %s215, %s218
    %p224 = scmp.eq.s32.totalorder %s14, 0
    %p225 = por %p223, %p224
    %p226 = scmp.ne.s32.totalorder %s215, %s218
    %p227 = scmp.eq.s32.totalorder %s19, 1
    %p228 = por %p226, %p227
    %p229 = scmp.ne.s32.totalorder %s218, %s219
    %p230 = scmp.eq.s32.totalorder %s19, 0
    %p231 = por %p229, %p230
    %p232 = scmp.ne.s32.totalorder %s218, %s219
    %p233 = scmp.eq.s32.totalorder %s20, 1
    %p234 = por %p232, %p233
    %p236 = scmp.ne.s32.totalorder %s219, %s235
    %p237 = scmp.eq.s32.totalorder %s20, 0
    %p238 = por %p236, %p237
    %s239 = ssub.s32 %s22, %s29
    %s240 = ssub.s32 %s21, %s33
    %s241 = sor.u32 %s239, %s240
    %p242 = scmp.eq.s32.totalorder %s241, 0
    %s244 = sadd.s32 %s243, 1
    %s245 = scalar_select %p242, %s243, %s244
    %p248 = pneg %p242
    %p249 = scmp.eq.s32.totalorder %s14, 1
    %p250 = por %p248, %p249
    %p251 = scmp.ne.s32.totalorder %s243, %s246
    %p252 = scmp.eq.s32.totalorder %s14, 0
    %p253 = por %p251, %p252
    %p254 = scmp.ne.s32.totalorder %s243, %s246
    %p255 = scmp.eq.s32.totalorder %s19, 1
    %p256 = por %p254, %p255
    %p257 = scmp.ne.s32.totalorder %s246, %s247
    %p258 = scmp.eq.s32.totalorder %s19, 0
    %p259 = por %p257, %p258
    %p260 = scmp.ne.s32.totalorder %s246, %s247
    %p261 = scmp.eq.s32.totalorder %s20, 1
    %p262 = por %p260, %p261
    %p264 = scmp.ne.s32.totalorder %s247, %s263
    %p265 = scmp.eq.s32.totalorder %s20, 0
    %p266 = por %p264, %p265
    %p267 = scmp.le.s32.totalorder 1, %s14
    %p268 = scmp.lt.s32.totalorder %s14, 3
    %p269 = pnand %p267, %p268
    %p270 = pneg %p269
    // Predicated region
    $region9: #{mml_forward.1} parent=5 // pred_check
      _
    $region10: #{mml_forward.1} parent=5 // pred_check_branch
      %272 = sbr.rel (%p269) target = $region12
    $region11: #{mml_forward.1} parent=5 // pred_region
      %s273 = ssub.s32 %s14, 1
      // Predicated region
      $region13: #{mml_forward.1} parent=11 // pred_check
        %p274 = pneg %p75
      $region14: #{mml_forward.1} parent=11 // pred_check_branch
        %276 = sbr.rel (%p274) target = $region16
      $region15: #{mml_forward.1} parent=11 // pred_region
        _
      $region16: #{mml_forward.1} parent=11 // pred_fallthru
        _
    $region12: #{mml_forward.1} parent=5 // pred_fallthru
      _
    %p277 = scmp.lt.s32.totalorder %s14, 2
    // Predicated region
    $region17: #{mml_forward.1} parent=5 // pred_check
      %p278 = pneg %p277
    $region18: #{mml_forward.1} parent=5 // pred_check_branch
      %280 = sbr.rel (%p278) target = $region20
    $region19: #{mml_forward.1} parent=5 // pred_region
      // Predicated region
      $region21: #{mml_forward.1} parent=19 // pred_check
        %p281 = pneg %p48
      $region22: #{mml_forward.1} parent=19 // pred_check_branch
        %283 = sbr.rel (%p281) target = $region24
      $region23: #{mml_forward.1} parent=19 // pred_region
        %p284 = scmp.lt.s32.totalorder %s22, 1
        %s285 = scalar_select %p284, %s22, 1
        %p286 = scmp.lt.s32.totalorder %s21, 0
        %s287 = scalar_select %p286, %s21, 0
        %s288 = smul.addr %s287, 16
        %s289 = smul.addr %s285, 16
        %s290 = sadd.s32 %s288, %s289
        %s291 = smul.addr %s290, 4
        %s292 = scalar_lea.vmem %s0, %s291
      $region24: #{mml_forward.1} parent=19 // pred_fallthru
        _
      // Predicated region
      $region25: #{mml_forward.1} parent=19 // pred_check
        %p293 = pneg %p95
      $region26: #{mml_forward.1} parent=19 // pred_check_branch
        %295 = sbr.rel (%p293) target = $region28
      $region27: #{mml_forward.1} parent=19 // pred_region
        %p296 = scmp.lt.s32.totalorder %s22, 1
        %s297 = scalar_select %p296, %s22, 1
        %s298 = smul.addr %s297, 4
        %s299 = smul.addr %s298, 4
        %s300 = scalar_lea.vmem %s2, %s299
      $region28: #{mml_forward.1} parent=19 // pred_fallthru
        _
      // Predicated region
      $region29: #{mml_forward.1} parent=19 // pred_check
        %p301 = pneg %p121
      $region30: #{mml_forward.1} parent=19 // pred_check_branch
        %303 = sbr.rel (%p301) target = $region32
      $region31: #{mml_forward.1} parent=19 // pred_region
        %p304 = scmp.lt.s32.totalorder %s22, 1
        %s305 = scalar_select %p304, %s22, 1
        %s306 = smul.addr %s305, 4
        %s307 = smul.addr %s306, 8
        %s308 = scalar_lea.vmem %s3, %s307
      $region32: #{mml_forward.1} parent=19 // pred_fallthru
        _
      // Predicated region
      $region33: #{mml_forward.1} parent=19 // pred_check
        %p309 = pneg %p147
      $region34: #{mml_forward.1} parent=19 // pred_check_branch
        %311 = sbr.rel (%p309) target = $region36
      $region35: #{mml_forward.1} parent=19 // pred_region
        %p312 = scmp.lt.s32.totalorder %s22, 1
        %s313 = scalar_select %p312, %s22, 1
        %s314 = smul.addr %s313, 8
        %s315 = smul.addr %s314, 4
        %s316 = scalar_lea.vmem %s4, %s315
      $region36: #{mml_forward.1} parent=19 // pred_fallthru
        _
      // Predicated region
      $region37: #{mml_forward.1} parent=19 // pred_check
        %p317 = pneg %p173
      $region38: #{mml_forward.1} parent=19 // pred_check_branch
        %319 = sbr.rel (%p317) target = $region40
      $region39: #{mml_forward.1} parent=19 // pred_region
        %p320 = scmp.lt.s32.totalorder %s22, 1
        %s321 = scalar_select %p320, %s22, 1
        %s322 = smul.addr %s321, 8
        %s323 = smul.addr %s322, 8
        %s324 = scalar_lea.vmem %s5, %s323
      $region40: #{mml_forward.1} parent=19 // pred_fallthru
        _
      // Predicated region
      $region41: #{mml_forward.1} parent=19 // pred_check
        %p325 = pneg %p199
      $region42: #{mml_forward.1} parent=19 // pred_check_branch
        %327 = sbr.rel (%p325) target = $region44
      $region43: #{mml_forward.1} parent=19 // pred_region
        %p328 = scmp.lt.s32.totalorder %s22, 1
        %s329 = scalar_select %p328, %s22, 1
        %s330 = smul.addr %s329, 16
        %s331 = smul.addr %s330, 4
        %s332 = scalar_lea.vmem %s6, %s331
      $region44: #{mml_forward.1} parent=19 // pred_fallthru
        _
      // Predicated region
      $region45: #{mml_forward.1} parent=19 // pred_check
        %p333 = pneg %p225
      $region46: #{mml_forward.1} parent=19 // pred_check_branch
        %335 = sbr.rel (%p333) target = $region48
      $region47: #{mml_forward.1} parent=19 // pred_region
        %p336 = scmp.lt.s32.totalorder %s22, 1
        %s337 = scalar_select %p336, %s22, 1
        %s338 = smul.addr %s337, 16
        %s339 = smul.addr %s338, 8
        %s340 = scalar_lea.vmem %s7, %s339
      $region48: #{mml_forward.1} parent=19 // pred_fallthru
        _
    $region20: #{mml_forward.1} parent=5 // pred_fallthru
      _
    %p341 = scmp.le.s32.totalorder 1, %s14
    %p342 = scmp.lt.s32.totalorder %s14, 3
    %p343 = pnand %p341, %p342
    %p344 = pneg %p343
    // Predicated region
    $region49: #{mml_forward.1} parent=5 // pred_check
      _
    $region50: #{mml_forward.1} parent=5 // pred_check_branch
      %346 = sbr.rel (%p343) target = $region52
    $region51: #{mml_forward.1} parent=5 // pred_region
      %s347 = ssub.s32 %s14, 1
      %p348 = scmp.lt.s32.totalorder %s24, 1
      %s349 = scalar_select %p348, %s24, 1
      %p350 = scmp.lt.s32.totalorder %s23, 0
      %s351 = scalar_select %p350, %s23, 0
      %s352 = smul.addr %s351, 16
      %s353 = smul.addr %s349, 16
      %s354 = sadd.s32 %s352, %s353
      %s355 = smul.addr %s354, 4
      %s356 = scalar_lea.vmem %s0, %s355
      %p357 = pneg %p54
      %p358 = pneg %p51
      %p359 = pneg %p75
      %p360 = pneg %p72
      %p361 = scmp.lt.s32.totalorder %s24, 1
      %s362 = scalar_select %p361, %s24, 1
      %s363 = smul.addr %s362, 4
      %s364 = smul.addr %s363, 4
      %s365 = scalar_lea.vmem %s2, %s364
      %p366 = pneg %p101
      %p367 = pneg %p98
      %p368 = scmp.lt.s32.totalorder %s24, 1
      %s369 = scalar_select %p368, %s24, 1
      %s370 = smul.addr %s369, 4
      %s371 = smul.addr %s370, 8
      %s372 = scalar_lea.vmem %s3, %s371
      %p373 = pneg %p127
      %p374 = pneg %p124
      %p375 = scmp.lt.s32.totalorder %s24, 1
      %s376 = scalar_select %p375, %s24, 1
      %s377 = smul.addr %s376, 8
      %s378 = smul.addr %s377, 4
      %s379 = scalar_lea.vmem %s4, %s378
      %p380 = pneg %p153
      %p381 = pneg %p150
      %p382 = scmp.lt.s32.totalorder %s24, 1
      %s383 = scalar_select %p382, %s24, 1
      %s384 = smul.addr %s383, 8
      %s385 = smul.addr %s384, 8
      %s386 = scalar_lea.vmem %s5, %s385
      %p387 = pneg %p179
      %p388 = pneg %p176
      %p389 = scmp.lt.s32.totalorder %s24, 1
      %s390 = scalar_select %p389, %s24, 1
      %s391 = smul.addr %s390, 16
      %s392 = smul.addr %s391, 4
      %s393 = scalar_lea.vmem %s6, %s392
      %p394 = pneg %p205
      %p395 = pneg %p202
      %p396 = scmp.lt.s32.totalorder %s24, 1
      %s397 = scalar_select %p396, %s24, 1
      %s398 = smul.addr %s397, 16
      %s399 = smul.addr %s398, 8
      %s400 = scalar_lea.vmem %s7, %s399
      %p401 = pneg %p231
      %p402 = pneg %p228
      %p403 = pneg %p259
      %p404 = pneg %p256
      %p405 = scmp.lt.s32.totalorder %s24, 1
      %s406 = scalar_select %p405, %s24, 1
      %p407 = scmp.lt.s32.totalorder %s23, 0
      %s408 = scalar_select %p407, %s23, 0
      %s409 = smul.addr %s408, 16
      %s410 = smul.addr %s406, 16
      %s411 = sadd.s32 %s409, %s410
      %s412 = smul.addr %s411, 8
      %s413 = scalar_lea.vmem %s8, %s412
      %p414 = scmp.lt.s32.totalorder %s24, 1
      %s415 = scalar_select %p414, %s24, 1
      %p416 = scmp.lt.s32.totalorder %s23, 0
      %s417 = scalar_select %p416, %s23, 0
      %s418 = smul.addr %s417, 16
      %s419 = smul.addr %s415, 16
      %s420 = sadd.s32 %s418, %s419
      %s421 = smul.addr %s420, 4
      %s422 = scalar_lea.vmem %s0, %s421
      %p423 = scmp.lt.s32.totalorder %s24, 1
      %s424 = scalar_select %p423, %s24, 1
      %s425 = smul.addr %s424, 4
      %s426 = smul.addr %s425, 4
      %s427 = scalar_lea.vmem %s2, %s426
      %p428 = scmp.lt.s32.totalorder %s24, 1
      %s429 = scalar_select %p428, %s24, 1
      %s430 = smul.addr %s429, 4
      %s431 = smul.addr %s430, 8
      %s432 = scalar_lea.vmem %s3, %s431
      %p433 = scmp.lt.s32.totalorder %s24, 1
      %s434 = scalar_select %p433, %s24, 1
      %s435 = smul.addr %s434, 8
      %s436 = smul.addr %s435, 4
      %s437 = scalar_lea.vmem %s4, %s436
      %p438 = scmp.lt.s32.totalorder %s24, 1
      %s439 = scalar_select %p438, %s24, 1
      %s440 = smul.addr %s439, 8
      %s441 = smul.addr %s440, 8
      %s442 = scalar_lea.vmem %s5, %s441
      %p443 = scmp.lt.s32.totalorder %s24, 1
      %s444 = scalar_select %p443, %s24, 1
      %s445 = smul.addr %s444, 16
      %s446 = smul.addr %s445, 4
      %s447 = scalar_lea.vmem %s6, %s446
      %p448 = scmp.lt.s32.totalorder %s24, 1
      %s449 = scalar_select %p448, %s24, 1
      %s450 = smul.addr %s449, 16
      %s451 = smul.addr %s450, 8
      %s452 = scalar_lea.vmem %s7, %s451
      %p453 = scmp.lt.s32.totalorder %s24, 1
      %s454 = scalar_select %p453, %s24, 1
      %p455 = scmp.lt.s32.totalorder %s23, 0
      %s456 = scalar_select %p455, %s23, 0
      %s457 = smul.addr %s456, 16
      %s458 = smul.addr %s454, 16
      %s459 = sadd.s32 %s457, %s458
      %s460 = smul.addr %s459, 8
      %s461 = scalar_lea.vmem %s8, %s460
      %v463 = vld [vmem:[%s427] sm:$0xf]
      %v464 = vld [vmem:[%s427 + $0x4] sm:$0xf]
      %v465 = vld [vmem:[%s427 + $0x8] sm:$0xf]
      %v466 = vld [vmem:[%s427 + $0xc] sm:$0xf]
      %v467 = vld [vmem:[%s422] sm:$0xff]
      %v468 = vld [vmem:[%s422 + $0x8] sm:$0xff]
      %v469 = vld [vmem:[%s422 + $0x10] sm:$0xff]
      %v470 = vld [vmem:[%s422 + $0x18] sm:$0xff]
      %v471 = vld [vmem:[%s422 + $0x20] sm:$0xff]
      %v472 = vld [vmem:[%s422 + $0x28] sm:$0xff]
      %v473 = vld [vmem:[%s422 + $0x30] sm:$0xff]
      %v474 = vld [vmem:[%s422 + $0x38] sm:$0xff]
      %v475 = vld [vmem:[%s432] sm:$0xff]
      %v476 = vld [vmem:[%s432 + $0x8] sm:$0xff]
      %v477 = vld [vmem:[%s432 + $0x10] sm:$0xff]
      %v478 = vld [vmem:[%s432 + $0x18] sm:$0xff]
      %480 = vset.pattern.permute.xlu0 0
      %481 = vperm.xlu0 %480, %v475
      %v482 = vpop.permute.xlu0 %481
      %485 = vset.pattern.permute.xlu0 0
      %486 = vperm.xlu0 %485, %v476
      %v487 = vpop.permute.xlu0 %486
      %490 = vset.pattern.permute.xlu0 0
      %491 = vperm.xlu0 %490, %v477
      %v492 = vpop.permute.xlu0 %491
      %495 = vset.pattern.permute.xlu0 0
      %496 = vperm.xlu0 %495, %v478
      %v497 = vpop.permute.xlu0 %496
      %v503 = vunpack.c.l.b16 %v463
      %v504 = vunpack.c.l.b16 %v464
      %v505 = vunpack.c.l.b16 %v465
      %v506 = vunpack.c.l.b16 %v466
      %v507 = vpack.c.b16 %v504, %v503
      %v508 = vpack.c.b16 %v506, %v505
      %v517 = vunpack.c.l.b16 %v467
      %v518 = vunpack.c.h.b16 %v467
      %v519 = vunpack.c.l.b16 %v468
      %v520 = vunpack.c.h.b16 %v468
      %v521 = vunpack.c.l.b16 %v469
      %v522 = vunpack.c.h.b16 %v469
      %v523 = vunpack.c.l.b16 %v470
      %v524 = vunpack.c.h.b16 %v470
      %v525 = vunpack.c.l.b16 %v471
      %v526 = vunpack.c.h.b16 %v471
      %v527 = vunpack.c.l.b16 %v472
      %v528 = vunpack.c.h.b16 %v472
      %v529 = vunpack.c.l.b16 %v473
      %v530 = vunpack.c.h.b16 %v473
      %v531 = vunpack.c.l.b16 %v474
      %v532 = vunpack.c.h.b16 %v474
      %v533 = vpack.c.b16 %v521, %v517
      %v534 = vpack.c.b16 %v522, %v518
      %v535 = vpack.c.b16 %v523, %v519
      %v536 = vpack.c.b16 %v524, %v520
      %v537 = vpack.c.b16 %v529, %v525
      %v538 = vpack.c.b16 %v530, %v526
      %v539 = vpack.c.b16 %v531, %v527
      %v540 = vpack.c.b16 %v532, %v528
      %vm549 = vcmask 261120
      %v551 = vsel %vm549, %v507, 0
      %v554 = vsel %vm549, %v508, 0
      %556 = vmatprep.subr.bf16.mxu0 %v534
      %557 = vmatpush1.bf16.msra.mxu0 %v533
      %558 = vmatprep.subr.bf16.mxu0 %v538
      %559 = vmatpush1.bf16.msra.mxu0 %v537
      %560 = vmatprep.subr.bf16.mxu0 0
      %561 = vmatpush1.bf16.msra.mxu0 0
      %562 = vmatprep.subr.bf16.mxu0 0
      %563 = vmatpush1.bf16.msra.mxu0 0
      %564 = vmatprep.subr.bf16.mxu0 0
      %565 = vmatpush1.bf16.msra.mxu0 0
      %566 = vmatprep.subr.bf16.mxu0 0
      %567 = vmatpush1.bf16.msra.mxu0 0
      %568 = vmatprep.subr.bf16.mxu0 0
      %569 = vmatpush1.bf16.msra.mxu0 0
      %570 = vmatprep.subr.bf16.mxu0 0
      %571 = vmatpush1.bf16.msra.mxu0 0
      %572 = vmatprep.subr.bf16.mxu0 0
      %573 = vmatpush1.bf16.msra.mxu0 0
      %574 = vmatprep.subr.bf16.mxu0 0
      %575 = vmatpush1.bf16.msra.mxu0 0
      %576 = vmatprep.subr.bf16.mxu0 0
      %577 = vmatpush1.bf16.msra.mxu0 0
      %578 = vmatprep.subr.bf16.mxu0 0
      %579 = vmatpush1.bf16.msra.mxu0 0
      %580 = vmatprep.subr.bf16.mxu0 0
      %581 = vmatpush1.bf16.msra.mxu0 0
      %582 = vmatprep.subr.bf16.mxu0 0
      %583 = vmatpush1.bf16.msra.mxu0 0
      %584 = vmatprep.subr.bf16.mxu0 0
      %585 = vmatpush1.bf16.msra.mxu0 0
      %586 = vmatprep.subr.bf16.mxu0 0
      %587 = vmatpush1.bf16.msra.mxu0 0
      %588 = vmatprep.mubr.bf16.mxu0 0
      %589 = vmatmul.mubr.bf16.gmra.mrb[0].mxu0 %v551
      %v590 = vpop.f32.mrb[0].mxu0
      %v591 = vadd.f32 %v482, %v590
      %v592 = vpop.f32.mrb[0].mxu0
      %v593 = vadd.f32 %v482, %v592
      %v594 = vpop.f32.mrb[0].mxu0
      %v595 = vadd.f32 %v487, %v594
      %v596 = vpop.f32.mrb[0].mxu0
      %v597 = vadd.f32 %v487, %v596
      %598 = vmatprep.mubr.bf16.mxu0 0
      %599 = vmatmul.mubr.bf16.gmra.mrb[0].mxu0 %v554
      %v600 = vpop.f32.mrb[0].mxu0
      %v601 = vadd.f32 %v492, %v600
      %v602 = vpop.f32.mrb[0].mxu0
      %v603 = vadd.f32 %v492, %v602
      %v604 = vpop.f32.mrb[0].mxu0
      %v605 = vadd.f32 %v497, %v604
      %v606 = vpop.f32.mrb[0].mxu0
      %v607 = vadd.f32 %v497, %v606
      %608 = vdwg.mxu0
      %609 = vmatprep.subr.bf16.mxu0 %v536
      %610 = vmatpush1.bf16.msra.mxu0 %v535
      %611 = vmatprep.subr.bf16.mxu0 %v540
      %612 = vmatpush1.bf16.msra.mxu0 %v539
      %613 = vmatprep.subr.bf16.mxu0 0
      %614 = vmatpush1.bf16.msra.mxu0 0
      %615 = vmatprep.subr.bf16.mxu0 0
      %616 = vmatpush1.bf16.msra.mxu0 0
      %617 = vmatprep.subr.bf16.mxu0 0
      %618 = vmatpush1.bf16.msra.mxu0 0
      %619 = vmatprep.subr.bf16.mxu0 0
      %620 = vmatpush1.bf16.msra.mxu0 0
      %621 = vmatprep.subr.bf16.mxu0 0
      %622 = vmatpush1.bf16.msra.mxu0 0
      %623 = vmatprep.subr.bf16.mxu0 0
      %624 = vmatpush1.bf16.msra.mxu0 0
      %625 = vmatprep.subr.bf16.mxu0 0
      %626 = vmatpush1.bf16.msra.mxu0 0
      %627 = vmatprep.subr.bf16.mxu0 0
      %628 = vmatpush1.bf16.msra.mxu0 0
      %629 = vmatprep.subr.bf16.mxu0 0
      %630 = vmatpush1.bf16.msra.mxu0 0
      %631 = vmatprep.subr.bf16.mxu0 0
      %632 = vmatpush1.bf16.msra.mxu0 0
      %633 = vmatprep.subr.bf16.mxu0 0
      %634 = vmatpush1.bf16.msra.mxu0 0
      %635 = vmatprep.subr.bf16.mxu0 0
      %636 = vmatpush1.bf16.msra.mxu0 0
      %637 = vmatprep.subr.bf16.mxu0 0
      %638 = vmatpush1.bf16.msra.mxu0 0
      %639 = vmatprep.subr.bf16.mxu0 0
      %640 = vmatpush1.bf16.msra.mxu0 0
      %641 = vmatprep.mubr.bf16.mxu0 0
      %642 = vmatmul.mubr.bf16.gmra.mrb[0].mxu0 %v551
      %v643 = vpop.f32.mrb[0].mxu0
      %v644 = vadd.f32 %v482, %v643
      %v645 = vpop.f32.mrb[0].mxu0
      %v646 = vadd.f32 %v482, %v645
      %v647 = vpop.f32.mrb[0].mxu0
      %v648 = vadd.f32 %v487, %v647
      %v649 = vpop.f32.mrb[0].mxu0
      %v650 = vadd.f32 %v487, %v649
      %651 = vmatprep.mubr.bf16.mxu0 0
      %652 = vmatmul.mubr.bf16.gmra.mrb[0].mxu0 %v554
      %v653 = vpop.f32.mrb[0].mxu0
      %v654 = vadd.f32 %v492, %v653
      %v655 = vpop.f32.mrb[0].mxu0
      %v656 = vadd.f32 %v492, %v655
      %v657 = vpop.f32.mrb[0].mxu0
      %v658 = vadd.f32 %v497, %v657
      %v659 = vpop.f32.mrb[0].mxu0
      %v660 = vadd.f32 %v497, %v659
      %661 = vdwg.mxu0
      %v662 = vmax.f32 %v591, 0.0
      %v663 = vmax.f32 %v593, 0.0
      %v664 = vmax.f32 %v644, 0.0
      %v665 = vmax.f32 %v646, 0.0
      %v666 = vmax.f32 %v595, 0.0
      %v667 = vmax.f32 %v597, 0.0
      %v668 = vmax.f32 %v648, 0.0
      %v669 = vmax.f32 %v650, 0.0
      %v670 = vmax.f32 %v601, 0.0
      %v671 = vmax.f32 %v603, 0.0
      %v672 = vmax.f32 %v654, 0.0
      %v673 = vmax.f32 %v656, 0.0
      %v674 = vmax.f32 %v605, 0.0
      %v675 = vmax.f32 %v607, 0.0
      %v676 = vmax.f32 %v658, 0.0
      %v677 = vmax.f32 %v660, 0.0
      %v678 = vpack.c.bf16 %v666, %v662
      %v679 = vpack.c.bf16 %v667, %v663
      %v680 = vpack.c.bf16 %v668, %v664
      %v681 = vpack.c.bf16 %v669, %v665
      %v682 = vpack.c.bf16 %v674, %v670
      %v683 = vpack.c.bf16 %v675, %v671
      %v684 = vpack.c.bf16 %v676, %v672
      %v685 = vpack.c.bf16 %v677, %v673
      %v686 = vld [vmem:[%s1] sm:$0xf]
      %v687 = vld [vmem:[%s1 + $0x4] sm:$0xf]
      %v688 = vld [vmem:[%s1 + $0x8] sm:$0xf]
      %v689 = vld [vmem:[%s1 + $0xc] sm:$0xf]
      %v690 = vld [vmem:[%s1 + $0x10] sm:$0xf]
      %v691 = vld [vmem:[%s1 + $0x14] sm:$0xf]
      %v692 = vld [vmem:[%s1 + $0x18] sm:$0xf]
      %v693 = vld [vmem:[%s1 + $0x1c] sm:$0xf]
      %v694 = vld [vmem:[%s1 + $0x20] sm:$0xf]
      %v695 = vld [vmem:[%s1 + $0x24] sm:$0xf]
      %v696 = vld [vmem:[%s1 + $0x28] sm:$0xf]
      %v697 = vld [vmem:[%s1 + $0x2c] sm:$0xf]
      %v698 = vld [vmem:[%s1 + $0x30] sm:$0xf]
      %v699 = vld [vmem:[%s1 + $0x34] sm:$0xf]
      %v700 = vld [vmem:[%s1 + $0x38] sm:$0xf]
      %v701 = vld [vmem:[%s1 + $0x3c] sm:$0xf]
      %v702 = vld [vmem:[%s1 + $0x40] sm:$0xf]
      %v703 = vld [vmem:[%s1 + $0x44] sm:$0xf]
      %v704 = vld [vmem:[%s1 + $0x48] sm:$0xf]
      %v705 = vld [vmem:[%s1 + $0x4c] sm:$0xf]
      %v706 = vld [vmem:[%s1 + $0x50] sm:$0xf]
      %v707 = vld [vmem:[%s1 + $0x54] sm:$0xf]
      %v708 = vld [vmem:[%s1 + $0x58] sm:$0xf]
      %v709 = vld [vmem:[%s1 + $0x5c] sm:$0xf]
      %v710 = vld [vmem:[%s1 + $0x60] sm:$0xf]
      %v711 = vld [vmem:[%s1 + $0x64] sm:$0xf]
      %v712 = vld [vmem:[%s1 + $0x68] sm:$0xf]
      %v713 = vld [vmem:[%s1 + $0x6c] sm:$0xf]
      %v714 = vld [vmem:[%s1 + $0x70] sm:$0xf]
      %v715 = vld [vmem:[%s1 + $0x74] sm:$0xf]
      %v716 = vld [vmem:[%s1 + $0x78] sm:$0xf]
      %v717 = vld [vmem:[%s1 + $0x7c] sm:$0xf]
      %v718 = vld [vmem:[%s1 + $0x80] sm:$0xf]
      %v719 = vld [vmem:[%s1 + $0x84] sm:$0xf]
      %v720 = vld [vmem:[%s1 + $0x88] sm:$0xf]
      %v721 = vld [vmem:[%s1 + $0x8c] sm:$0xf]
      %v722 = vld [vmem:[%s1 + $0x90] sm:$0xf]
      %v723 = vld [vmem:[%s1 + $0x94] sm:$0xf]
      %v724 = vld [vmem:[%s1 + $0x98] sm:$0xf]
      %v725 = vld [vmem:[%s1 + $0x9c] sm:$0xf]
      %v726 = vld [vmem:[%s1 + $0xa0] sm:$0xf]
      %v727 = vld [vmem:[%s1 + $0xa4] sm:$0xf]
      %v728 = vld [vmem:[%s1 + $0xa8] sm:$0xf]
      %v729 = vld [vmem:[%s1 + $0xac] sm:$0xf]
      %v730 = vld [vmem:[%s1 + $0xb0] sm:$0xf]
      %v731 = vld [vmem:[%s1 + $0xb4] sm:$0xf]
      %v732 = vld [vmem:[%s1 + $0xb8] sm:$0xf]
      %v733 = vld [vmem:[%s1 + $0xbc] sm:$0xf]
      %v734 = vld [vmem:[%s1 + $0xc0] sm:$0xf]
      %v735 = vld [vmem:[%s1 + $0xc4] sm:$0xf]
      %v736 = vld [vmem:[%s1 + $0xc8] sm:$0xf]
      %v737 = vld [vmem:[%s1 + $0xcc] sm:$0xf]
      %v738 = vld [vmem:[%s1 + $0xd0] sm:$0xf]
      %v739 = vld [vmem:[%s1 + $0xd4] sm:$0xf]
      %v740 = vld [vmem:[%s1 + $0xd8] sm:$0xf]
      %v741 = vld [vmem:[%s1 + $0xdc] sm:$0xf]
      %v742 = vld [vmem:[%s1 + $0xe0] sm:$0xf]
      %v743 = vld [vmem:[%s1 + $0xe4] sm:$0xf]
      %v744 = vld [vmem:[%s1 + $0xe8] sm:$0xf]
      %v745 = vld [vmem:[%s1 + $0xec] sm:$0xf]
      %v746 = vld [vmem:[%s1 + $0xf0] sm:$0xf]
      %v747 = vld [vmem:[%s1 + $0xf4] sm:$0xf]
      %v748 = vld [vmem:[%s1 + $0xf8] sm:$0xf]
      %v749 = vld [vmem:[%s1 + $0xfc] sm:$0xf]
      %v814 = vunpack.c.l.b16 %v686
      %v815 = vunpack.c.l.b16 %v687
      %v816 = vunpack.c.l.b16 %v688
      %v817 = vunpack.c.l.b16 %v689
      %v818 = vunpack.c.l.b16 %v690
      %v819 = vunpack.c.l.b16 %v691
      %v820 = vunpack.c.l.b16 %v692
      %v821 = vunpack.c.l.b16 %v693
      %v822 = vunpack.c.l.b16 %v694
      %v823 = vunpack.c.l.b16 %v695
      %v824 = vunpack.c.l.b16 %v696
      %v825 = vunpack.c.l.b16 %v697
      %v826 = vunpack.c.l.b16 %v698
      %v827 = vunpack.c.l.b16 %v699
      %v828 = vunpack.c.l.b16 %v700
      %v829 = vunpack.c.l.b16 %v701
      %v830 = vunpack.c.l.b16 %v702
      %v831 = vunpack.c.l.b16 %v703
      %v832 = vunpack.c.l.b16 %v704
      %v833 = vunpack.c.l.b16 %v705
      %v834 = vunpack.c.l.b16 %v706
      %v835 = vunpack.c.l.b16 %v707
      %v836 = vunpack.c.l.b16 %v708
      %v837 = vunpack.c.l.b16 %v709
      %v838 = vunpack.c.l.b16 %v710
      %v839 = vunpack.c.l.b16 %v711
      %v840 = vunpack.c.l.b16 %v712
      %v841 = vunpack.c.l.b16 %v713
      %v842 = vunpack.c.l.b16 %v714
      %v843 = vunpack.c.l.b16 %v715
      %v844 = vunpack.c.l.b16 %v716
      %v845 = vunpack.c.l.b16 %v717
      %v846 = vunpack.c.l.b16 %v718
      %v847 = vunpack.c.l.b16 %v719
      %v848 = vunpack.c.l.b16 %v720
      %v849 = vunpack.c.l.b16 %v721
      %v850 = vunpack.c.l.b16 %v722
      %v851 = vunpack.c.l.b16 %v723
      %v852 = vunpack.c.l.b16 %v724
      %v853 = vunpack.c.l.b16 %v725
      %v854 = vunpack.c.l.b16 %v726
      %v855 = vunpack.c.l.b16 %v727
      %v856 = vunpack.c.l.b16 %v728
      %v857 = vunpack.c.l.b16 %v729
      %v858 = vunpack.c.l.b16 %v730
      %v859 = vunpack.c.l.b16 %v731
      %v860 = vunpack.c.l.b16 %v732
      %v861 = vunpack.c.l.b16 %v733
      %v862 = vunpack.c.l.b16 %v734
      %v863 = vunpack.c.l.b16 %v735
      %v864 = vunpack.c.l.b16 %v736
      %v865 = vunpack.c.l.b16 %v737
      %v866 = vunpack.c.l.b16 %v738
      %v867 = vunpack.c.l.b16 %v739
      %v868 = vunpack.c.l.b16 %v740
      %v869 = vunpack.c.l.b16 %v741
      %v870 = vunpack.c.l.b16 %v742
      %v871 = vunpack.c.l.b16 %v743
      %v872 = vunpack.c.l.b16 %v744
      %v873 = vunpack.c.l.b16 %v745
      %v874 = vunpack.c.l.b16 %v746
      %v875 = vunpack.c.l.b16 %v747
      %v876 = vunpack.c.l.b16 %v748
      %v877 = vunpack.c.l.b16 %v749
      %v878 = vpack.c.b16 %v815, %v814
      %v879 = vpack.c.b16 %v817, %v816
      %v880 = vpack.c.b16 %v819, %v818
      %v881 = vpack.c.b16 %v821, %v820
      %v882 = vpack.c.b16 %v823, %v822
      %v883 = vpack.c.b16 %v825, %v824
      %v884 = vpack.c.b16 %v827, %v826
      %v885 = vpack.c.b16 %v829, %v828
      %v886 = vpack.c.b16 %v831, %v830
      %v887 = vpack.c.b16 %v833, %v832
      %v888 = vpack.c.b16 %v835, %v834
      %v889 = vpack.c.b16 %v837, %v836
      %v890 = vpack.c.b16 %v839, %v838
      %v891 = vpack.c.b16 %v841, %v840
      %v892 = vpack.c.b16 %v843, %v842
      %v893 = vpack.c.b16 %v845, %v844
      %v894 = vpack.c.b16 %v847, %v846
      %v895 = vpack.c.b16 %v849, %v848
      %v896 = vpack.c.b16 %v851, %v850
      %v897 = vpack.c.b16 %v853, %v852
      %v898 = vpack.c.b16 %v855, %v854
      %v899 = vpack.c.b16 %v857, %v856
      %v900 = vpack.c.b16 %v859, %v858
      %v901 = vpack.c.b16 %v861, %v860
      %v902 = vpack.c.b16 %v863, %v862
      %v903 = vpack.c.b16 %v865, %v864
      %v904 = vpack.c.b16 %v867, %v866
      %v905 = vpack.c.b16 %v869, %v868
      %v906 = vpack.c.b16 %v871, %v870
      %v907 = vpack.c.b16 %v873, %v872
      %v908 = vpack.c.b16 %v875, %v874
      %v909 = vpack.c.b16 %v877, %v876
      %942 = vmatprep.subr.bf16.mxu0 0
      %943 = vmatpush1.bf16.msra.mxu0 %v878
      %944 = vmatprep.subr.bf16.mxu0 0
      %945 = vmatpush1.bf16.msra.mxu0 %v879
      %946 = vmatprep.subr.bf16.mxu0 0
      %947 = vmatpush1.bf16.msra.mxu0 %v880
      %948 = vmatprep.subr.bf16.mxu0 0
      %949 = vmatpush1.bf16.msra.mxu0 %v881
      %950 = vmatprep.subr.bf16.mxu0 0
      %951 = vmatpush1.bf16.msra.mxu0 %v882
      %952 = vmatprep.subr.bf16.mxu0 0
      %953 = vmatpush1.bf16.msra.mxu0 %v883
      %954 = vmatprep.subr.bf16.mxu0 0
      %955 = vmatpush1.bf16.msra.mxu0 %v884
      %956 = vmatprep.subr.bf16.mxu0 0
      %957 = vmatpush1.bf16.msra.mxu0 %v885
      %958 = vmatprep.subr.bf16.mxu0 0
      %959 = vmatpush1.bf16.msra.mxu0 %v886
      %960 = vmatprep.subr.bf16.mxu0 0
      %961 = vmatpush1.bf16.msra.mxu0 %v887
      %962 = vmatprep.subr.bf16.mxu0 0
      %963 = vmatpush1.bf16.msra.mxu0 %v888
      %964 = vmatprep.subr.bf16.mxu0 0
      %965 = vmatpush1.bf16.msra.mxu0 %v889
      %966 = vmatprep.subr.bf16.mxu0 0
      %967 = vmatpush1.bf16.msra.mxu0 %v890
      %968 = vmatprep.subr.bf16.mxu0 0
      %969 = vmatpush1.bf16.msra.mxu0 %v891
      %970 = vmatprep.subr.bf16.mxu0 0
      %971 = vmatpush1.bf16.msra.mxu0 %v892
      %972 = vmatprep.subr.bf16.mxu0 0
      %973 = vmatpush1.bf16.msra.mxu0 %v893
      %974 = vmatprep.mubr.bf16.mxu0 %v679
      %975 = vmatmul.mubr.bf16.gmra.mrb[0].mxu0 %v678
      %v976 = vpop.f32.mrb[0].mxu0
      %v977 = vadd.f32 0.0, %v976
      %v978 = vpop.f32.mrb[0].mxu0
      %v979 = vpop.f32.mrb[0].mxu0
      %v980 = vadd.f32 0.0, %v979
      %v981 = vpop.f32.mrb[0].mxu0
      %982 = vmatprep.mubr.bf16.mxu0 %v683
      %983 = vmatmul.mubr.bf16.gmra.mrb[0].mxu0 %v682
      %v984 = vpop.f32.mrb[0].mxu0
      %v985 = vadd.f32 0.0, %v984
      %v986 = vpop.f32.mrb[0].mxu0
      %v987 = vpop.f32.mrb[0].mxu0
      %v988 = vadd.f32 0.0, %v987
      %v989 = vpop.f32.mrb[0].mxu0
      %990 = vdwg.mxu0
      %991 = vmatprep.subr.bf16.mxu0 0
      %992 = vmatpush1.bf16.msra.mxu0 %v894
      %993 = vmatprep.subr.bf16.mxu0 0
      %994 = vmatpush1.bf16.msra.mxu0 %v895
      %995 = vmatprep.subr.bf16.mxu0 0
      %996 = vmatpush1.bf16.msra.mxu0 %v896
      %997 = vmatprep.subr.bf16.mxu0 0
      %998 = vmatpush1.bf16.msra.mxu0 %v897
      %999 = vmatprep.subr.bf16.mxu0 0
      %1000 = vmatpush1.bf16.msra.mxu0 %v898
      %1001 = vmatprep.subr.bf16.mxu0 0
      %1002 = vmatpush1.bf16.msra.mxu0 %v899
      %1003 = vmatprep.subr.bf16.mxu0 0
      %1004 = vmatpush1.bf16.msra.mxu0 %v900
      %1005 = vmatprep.subr.bf16.mxu0 0
      %1006 = vmatpush1.bf16.msra.mxu0 %v901
      %1007 = vmatprep.subr.bf16.mxu0 0
      %1008 = vmatpush1.bf16.msra.mxu0 %v902
      %1009 = vmatprep.subr.bf16.mxu0 0
      %1010 = vmatpush1.bf16.msra.mxu0 %v903
      %1011 = vmatprep.subr.bf16.mxu0 0
      %1012 = vmatpush1.bf16.msra.mxu0 %v904
      %1013 = vmatprep.subr.bf16.mxu0 0
      %1014 = vmatpush1.bf16.msra.mxu0 %v905
      %1015 = vmatprep.subr.bf16.mxu0 0
      %1016 = vmatpush1.bf16.msra.mxu0 %v906
      %1017 = vmatprep.subr.bf16.mxu0 0
      %1018 = vmatpush1.bf16.msra.mxu0 %v907
      %1019 = vmatprep.subr.bf16.mxu0 0
      %1020 = vmatpush1.bf16.msra.mxu0 %v908
      %1021 = vmatprep.subr.bf16.mxu0 0
      %1022 = vmatpush1.bf16.msra.mxu0 %v909
      %1023 = vmatprep.mubr.bf16.mxu0 %v681
      %1024 = vmatmul.mubr.bf16.gmra.mrb[0].mxu0 %v680
      %v1025 = vpop.f32.mrb[0].mxu0
      %v1026 = vadd.f32 %v977, %v1025
      %v1027 = vpop.f32.mrb[0].mxu0
      %v1028 = vpop.f32.mrb[0].mxu0
      %v1029 = vadd.f32 %v980, %v1028
      %v1030 = vpop.f32.mrb[0].mxu0
      %1031 = vmatprep.mubr.bf16.mxu0 %v685
      %1032 = vmatmul.mubr.bf16.gmra.mrb[0].mxu0 %v684
      %v1033 = vpop.f32.mrb[0].mxu0
      %v1034 = vadd.f32 %v985, %v1033
      %v1035 = vpop.f32.mrb[0].mxu0
      %v1036 = vpop.f32.mrb[0].mxu0
      %v1037 = vadd.f32 %v988, %v1036
      %v1038 = vpop.f32.mrb[0].mxu0
      %1039 = vdwg.mxu0
      %s1040 = scalar_lea.vmem %s1, 256
      %v1041 = vld [vmem:[%s1040] sm:$0xf]
      %v1042 = vld [vmem:[%s1040 + $0x4] sm:$0xf]
      %v1043 = vld [vmem:[%s1040 + $0x8] sm:$0xf]
      %v1044 = vld [vmem:[%s1040 + $0xc] sm:$0xf]
      %v1045 = vld [vmem:[%s1040 + $0x10] sm:$0xf]
      %v1046 = vld [vmem:[%s1040 + $0x14] sm:$0xf]
      %v1047 = vld [vmem:[%s1040 + $0x18] sm:$0xf]
      %v1048 = vld [vmem:[%s1040 + $0x1c] sm:$0xf]
      %v1049 = vld [vmem:[%s1040 + $0x20] sm:$0xf]
      %v1050 = vld [vmem:[%s1040 + $0x24] sm:$0xf]
      %v1051 = vld [vmem:[%s1040 + $0x28] sm:$0xf]
      %v1052 = vld [vmem:[%s1040 + $0x2c] sm:$0xf]
      %v1053 = vld [vmem:[%s1040 + $0x30] sm:$0xf]
      %v1054 = vld [vmem:[%s1040 + $0x34] sm:$0xf]
      %v1055 = vld [vmem:[%s1040 + $0x38] sm:$0xf]
      %v1056 = vld [vmem:[%s1040 + $0x3c] sm:$0xf]
      %v1057 = vld [vmem:[%s1040 + $0x40] sm:$0xf]
      %v1058 = vld [vmem:[%s1040 + $0x44] sm:$0xf]
      %v1059 = vld [vmem:[%s1040 + $0x48] sm:$0xf]
      %v1060 = vld [vmem:[%s1040 + $0x4c] sm:$0xf]
      %v1061 = vld [vmem:[%s1040 + $0x50] sm:$0xf]
      %v1062 = vld [vmem:[%s1040 + $0x54] sm:$0xf]
      %v1063 = vld [vmem:[%s1040 + $0x58] sm:$0xf]
      %v1064 = vld [vmem:[%s1040 + $0x5c] sm:$0xf]
      %v1065 = vld [vmem:[%s1040 + $0x60] sm:$0xf]
      %v1066 = vld [vmem:[%s1040 + $0x64] sm:$0xf]
      %v1067 = vld [vmem:[%s1040 + $0x68] sm:$0xf]
      %v1068 = vld [vmem:[%s1040 + $0x6c] sm:$0xf]
      %v1069 = vld [vmem:[%s1040 + $0x70] sm:$0xf]
      %v1070 = vld [vmem:[%s1040 + $0x74] sm:$0xf]
      %v1071 = vld [vmem:[%s1040 + $0x78] sm:$0xf]
      %v1072 = vld [vmem:[%s1040 + $0x7c] sm:$0xf]
      %v1073 = vld [vmem:[%s1040 + $0x80] sm:$0xf]
      %v1074 = vld [vmem:[%s1040 + $0x84] sm:$0xf]
      %v1075 = vld [vmem:[%s1040 + $0x88] sm:$0xf]
      %v1076 = vld [vmem:[%s1040 + $0x8c] sm:$0xf]
      %v1077 = vld [vmem:[%s1040 + $0x90] sm:$0xf]
      %v1078 = vld [vmem:[%s1040 + $0x94] sm:$0xf]
      %v1079 = vld [vmem:[%s1040 + $0x98] sm:$0xf]
      %v1080 = vld [vmem:[%s1040 + $0x9c] sm:$0xf]
      %v1081 = vld [vmem:[%s1040 + $0xa0] sm:$0xf]
      %v1082 = vld [vmem:[%s1040 + $0xa4] sm:$0xf]
      %v1083 = vld [vmem:[%s1040 + $0xa8] sm:$0xf]
      %v1084 = vld [vmem:[%s1040 + $0xac] sm:$0xf]
      %v1085 = vld [vmem:[%s1040 + $0xb0] sm:$0xf]
      %v1086 = vld [vmem:[%s1040 + $0xb4] sm:$0xf]
      %v1087 = vld [vmem:[%s1040 + $0xb8] sm:$0xf]
      %v1088 = vld [vmem:[%s1040 + $0xbc] sm:$0xf]
      %v1089 = vld [vmem:[%s1040 + $0xc0] sm:$0xf]
      %v1090 = vld [vmem:[%s1040 + $0xc4] sm:$0xf]
      %v1091 = vld [vmem:[%s1040 + $0xc8] sm:$0xf]
      %v1092 = vld [vmem:[%s1040 + $0xcc] sm:$0xf]
      %v1093 = vld [vmem:[%s1040 + $0xd0] sm:$0xf]
      %v1094 = vld [vmem:[%s1040 + $0xd4] sm:$0xf]
      %v1095 = vld [vmem:[%s1040 + $0xd8] sm:$0xf]
      %v1096 = vld [vmem:[%s1040 + $0xdc] sm:$0xf]
      %v1097 = vld [vmem:[%s1040 + $0xe0] sm:$0xf]
      %v1098 = vld [vmem:[%s1040 + $0xe4] sm:$0xf]
      %v1099 = vld [vmem:[%s1040 + $0xe8] sm:$0xf]
      %v1100 = vld [vmem:[%s1040 + $0xec] sm:$0xf]
      %v1101 = vld [vmem:[%s1040 + $0xf0] sm:$0xf]
      %v1102 = vld [vmem:[%s1040 + $0xf4] sm:$0xf]
      %v1103 = vld [vmem:[%s1040 + $0xf8] sm:$0xf]
      %v1104 = vld [vmem:[%s1040 + $0xfc] sm:$0xf]
      %v1169 = vunpack.c.l.b16 %v1041
      %v1170 = vunpack.c.l.b16 %v1042
      %v1171 = vunpack.c.l.b16 %v1043
      %v1172 = vunpack.c.l.b16 %v1044
      %v1173 = vunpack.c.l.b16 %v1045
      %v1174 = vunpack.c.l.b16 %v1046
      %v1175 = vunpack.c.l.b16 %v1047
      %v1176 = vunpack.c.l.b16 %v1048
      %v1177 = vunpack.c.l.b16 %v1049
      %v1178 = vunpack.c.l.b16 %v1050
      %v1179 = vunpack.c.l.b16 %v1051
      %v1180 = vunpack.c.l.b16 %v1052
      %v1181 = vunpack.c.l.b16 %v1053
      %v1182 = vunpack.c.l.b16 %v1054
      %v1183 = vunpack.c.l.b16 %v1055
      %v1184 = vunpack.c.l.b16 %v1056
      %v1185 = vunpack.c.l.b16 %v1057
      %v1186 = vunpack.c.l.b16 %v1058
      %v1187 = vunpack.c.l.b16 %v1059
      %v1188 = vunpack.c.l.b16 %v1060
      %v1189 = vunpack.c.l.b16 %v1061
      %v1190 = vunpack.c.l.b16 %v1062
      %v1191 = vunpack.c.l.b16 %v1063
      %v1192 = vunpack.c.l.b16 %v1064
      %v1193 = vunpack.c.l.b16 %v1065
      %v1194 = vunpack.c.l.b16 %v1066
      %v1195 = vunpack.c.l.b16 %v1067
      %v1196 = vunpack.c.l.b16 %v1068
      %v1197 = vunpack.c.l.b16 %v1069
      %v1198 = vunpack.c.l.b16 %v1070
      %v1199 = vunpack.c.l.b16 %v1071
      %v1200 = vunpack.c.l.b16 %v1072
      %v1201 = vunpack.c.l.b16 %v1073
      %v1202 = vunpack.c.l.b16 %v1074
      %v1203 = vunpack.c.l.b16 %v1075
      %v1204 = vunpack.c.l.b16 %v1076
      %v1205 = vunpack.c.l.b16 %v1077
      %v1206 = vunpack.c.l.b16 %v1078
      %v1207 = vunpack.c.l.b16 %v1079
      %v1208 = vunpack.c.l.b16 %v1080
      %v1209 = vunpack.c.l.b16 %v1081
      %v1210 = vunpack.c.l.b16 %v1082
      %v1211 = vunpack.c.l.b16 %v1083
      %v1212 = vunpack.c.l.b16 %v1084
      %v1213 = vunpack.c.l.b16 %v1085
      %v1214 = vunpack.c.l.b16 %v1086
      %v1215 = vunpack.c.l.b16 %v1087
      %v1216 = vunpack.c.l.b16 %v1088
      %v1217 = vunpack.c.l.b16 %v1089
      %v1218 = vunpack.c.l.b16 %v1090
      %v1219 = vunpack.c.l.b16 %v1091
      %v1220 = vunpack.c.l.b16 %v1092
      %v1221 = vunpack.c.l.b16 %v1093
      %v1222 = vunpack.c.l.b16 %v1094
      %v1223 = vunpack.c.l.b16 %v1095
      %v1224 = vunpack.c.l.b16 %v1096
      %v1225 = vunpack.c.l.b16 %v1097
      %v1226 = vunpack.c.l.b16 %v1098
      %v1227 = vunpack.c.l.b16 %v1099
      %v1228 = vunpack.c.l.b16 %v1100
      %v1229 = vunpack.c.l.b16 %v1101
      %v1230 = vunpack.c.l.b16 %v1102
      %v1231 = vunpack.c.l.b16 %v1103
      %v1232 = vunpack.c.l.b16 %v1104
      %v1233 = vpack.c.b16 %v1170, %v1169
      %v1234 = vpack.c.b16 %v1172, %v1171
      %v1235 = vpack.c.b16 %v1174, %v1173
      %v1236 = vpack.c.b16 %v1176, %v1175
      %v1237 = vpack.c.b16 %v1178, %v1177
      %v1238 = vpack.c.b16 %v1180, %v1179
      %v1239 = vpack.c.b16 %v1182, %v1181
      %v1240 = vpack.c.b16 %v1184, %v1183
      %v1241 = vpack.c.b16 %v1186, %v1185
      %v1242 = vpack.c.b16 %v1188, %v1187
      %v1243 = vpack.c.b16 %v1190, %v1189
      %v1244 = vpack.c.b16 %v1192, %v1191
      %v1245 = vpack.c.b16 %v1194, %v1193
      %v1246 = vpack.c.b16 %v1196, %v1195
      %v1247 = vpack.c.b16 %v1198, %v1197
      %v1248 = vpack.c.b16 %v1200, %v1199
      %v1249 = vpack.c.b16 %v1202, %v1201
      %v1250 = vpack.c.b16 %v1204, %v1203
      %v1251 = vpack.c.b16 %v1206, %v1205
      %v1252 = vpack.c.b16 %v1208, %v1207
      %v1253 = vpack.c.b16 %v1210, %v1209
      %v1254 = vpack.c.b16 %v1212, %v1211
      %v1255 = vpack.c.b16 %v1214, %v1213
      %v1256 = vpack.c.b16 %v1216, %v1215
      %v1257 = vpack.c.b16 %v1218, %v1217
      %v1258 = vpack.c.b16 %v1220, %v1219
      %v1259 = vpack.c.b16 %v1222, %v1221
      %v1260 = vpack.c.b16 %v1224, %v1223
      %v1261 = vpack.c.b16 %v1226, %v1225
      %v1262 = vpack.c.b16 %v1228, %v1227
      %v1263 = vpack.c.b16 %v1230, %v1229
      %v1264 = vpack.c.b16 %v1232, %v1231
      %1297 = vmatprep.subr.bf16.mxu0 0
      %1298 = vmatpush1.bf16.msra.mxu0 %v1233
      %1299 = vmatprep.subr.bf16.mxu0 0
      %1300 = vmatpush1.bf16.msra.mxu0 %v1234
      %1301 = vmatprep.subr.bf16.mxu0 0
      %1302 = vmatpush1.bf16.msra.mxu0 %v1235
      %1303 = vmatprep.subr.bf16.mxu0 0
      %1304 = vmatpush1.bf16.msra.mxu0 %v1236
      %1305 = vmatprep.subr.bf16.mxu0 0
      %1306 = vmatpush1.bf16.msra.mxu0 %v1237
      %1307 = vmatprep.subr.bf16.mxu0 0
      %1308 = vmatpush1.bf16.msra.mxu0 %v1238
      %1309 = vmatprep.subr.bf16.mxu0 0
      %1310 = vmatpush1.bf16.msra.mxu0 %v1239
      %1311 = vmatprep.subr.bf16.mxu0 0
      %1312 = vmatpush1.bf16.msra.mxu0 %v1240
      %1313 = vmatprep.subr.bf16.mxu0 0
      %1314 = vmatpush1.bf16.msra.mxu0 %v1241
      %1315 = vmatprep.subr.bf16.mxu0 0
      %1316 = vmatpush1.bf16.msra.mxu0 %v1242
      %1317 = vmatprep.subr.bf16.mxu0 0
      %1318 = vmatpush1.bf16.msra.mxu0 %v1243
      %1319 = vmatprep.subr.bf16.mxu0 0
      %1320 = vmatpush1.bf16.msra.mxu0 %v1244
      %1321 = vmatprep.subr.bf16.mxu0 0
      %1322 = vmatpush1.bf16.msra.mxu0 %v1245
      %1323 = vmatprep.subr.bf16.mxu0 0
      %1324 = vmatpush1.bf16.msra.mxu0 %v1246
      %1325 = vmatprep.subr.bf16.mxu0 0
      %1326 = vmatpush1.bf16.msra.mxu0 %v1247
      %1327 = vmatprep.subr.bf16.mxu0 0
      %1328 = vmatpush1.bf16.msra.mxu0 %v1248
      %1329 = vmatprep.mubr.bf16.mxu0 %v679
      %1330 = vmatmul.mubr.bf16.gmra.mrb[0].mxu0 %v678
      %v1331 = vpop.f32.mrb[0].mxu0
      %v1332 = vadd.f32 0.0, %v1331
      %v1333 = vpop.f32.mrb[0].mxu0
      %v1334 = vpop.f32.mrb[0].mxu0
      %v1335 = vadd.f32 0.0, %v1334
      %v1336 = vpop.f32.mrb[0].mxu0
      %1337 = vmatprep.mubr.bf16.mxu0 %v683
      %1338 = vmatmul.mubr.bf16.gmra.mrb[0].mxu0 %v682
      %v1339 = vpop.f32.mrb[0].mxu0
      %v1340 = vadd.f32 0.0, %v1339
      %v1341 = vpop.f32.mrb[0].mxu0
      %v1342 = vpop.f32.mrb[0].mxu0
      %v1343 = vadd.f32 0.0, %v1342
      %v1344 = vpop.f32.mrb[0].mxu0
      %1345 = vdwg.mxu0
      %1346 = vmatprep.subr.bf16.mxu0 0
      %1347 = vmatpush1.bf16.msra.mxu0 %v1249
      %1348 = vmatprep.subr.bf16.mxu0 0
      %1349 = vmatpush1.bf16.msra.mxu0 %v1250
      %1350 = vmatprep.subr.bf16.mxu0 0
      %1351 = vmatpush1.bf16.msra.mxu0 %v1251
      %1352 = vmatprep.subr.bf16.mxu0 0
      %1353 = vmatpush1.bf16.msra.mxu0 %v1252
      %1354 = vmatprep.subr.bf16.mxu0 0
      %1355 = vmatpush1.bf16.msra.mxu0 %v1253
      %1356 = vmatprep.subr.bf16.mxu0 0
      %1357 = vmatpush1.bf16.msra.mxu0 %v1254
      %1358 = vmatprep.subr.bf16.mxu0 0
      %1359 = vmatpush1.bf16.msra.mxu0 %v1255
      %1360 = vmatprep.subr.bf16.mxu0 0
      %1361 = vmatpush1.bf16.msra.mxu0 %v1256
      %1362 = vmatprep.subr.bf16.mxu0 0
      %1363 = vmatpush1.bf16.msra.mxu0 %v1257
      %1364 = vmatprep.subr.bf16.mxu0 0
      %1365 = vmatpush1.bf16.msra.mxu0 %v1258
      %1366 = vmatprep.subr.bf16.mxu0 0
      %1367 = vmatpush1.bf16.msra.mxu0 %v1259
      %1368 = vmatprep.subr.bf16.mxu0 0
      %1369 = vmatpush1.bf16.msra.mxu0 %v1260
      %1370 = vmatprep.subr.bf16.mxu0 0
      %1371 = vmatpush1.bf16.msra.mxu0 %v1261
      %1372 = vmatprep.subr.bf16.mxu0 0
      %1373 = vmatpush1.bf16.msra.mxu0 %v1262
      %1374 = vmatprep.subr.bf16.mxu0 0
      %1375 = vmatpush1.bf16.msra.mxu0 %v1263
      %1376 = vmatprep.subr.bf16.mxu0 0
      %1377 = vmatpush1.bf16.msra.mxu0 %v1264
      %1378 = vmatprep.mubr.bf16.mxu0 %v681
      %1379 = vmatmul.mubr.bf16.gmra.mrb[0].mxu0 %v680
      %v1380 = vpop.f32.mrb[0].mxu0
      %v1381 = vadd.f32 %v1332, %v1380
      %v1382 = vpop.f32.mrb[0].mxu0
      %v1383 = vpop.f32.mrb[0].mxu0
      %v1384 = vadd.f32 %v1335, %v1383
      %v1385 = vpop.f32.mrb[0].mxu0
      %1386 = vmatprep.mubr.bf16.mxu0 %v685
      %1387 = vmatmul.mubr.bf16.gmra.mrb[0].mxu0 %v684
      %v1388 = vpop.f32.mrb[0].mxu0
      %v1389 = vadd.f32 %v1340, %v1388
      %v1390 = vpop.f32.mrb[0].mxu0
      %v1391 = vpop.f32.mrb[0].mxu0
      %v1392 = vadd.f32 %v1343, %v1391
      %v1393 = vpop.f32.mrb[0].mxu0
      %1394 = vdwg.mxu0
      %s1395 = scalar_lea.vmem %s1, 512
      %v1396 = vld [vmem:[%s1395] sm:$0xf]
      %v1397 = vld [vmem:[%s1395 + $0x4] sm:$0xf]
      %v1398 = vld [vmem:[%s1395 + $0x8] sm:$0xf]
      %v1399 = vld [vmem:[%s1395 + $0xc] sm:$0xf]
      %v1400 = vld [vmem:[%s1395 + $0x10] sm:$0xf]
      %v1401 = vld [vmem:[%s1395 + $0x14] sm:$0xf]
      %v1402 = vld [vmem:[%s1395 + $0x18] sm:$0xf]
      %v1403 = vld [vmem:[%s1395 + $0x1c] sm:$0xf]
      %v1404 = vld [vmem:[%s1395 + $0x20] sm:$0xf]
      %v1405 = vld [vmem:[%s1395 + $0x24] sm:$0xf]
      %v1406 = vld [vmem:[%s1395 + $0x28] sm:$0xf]
      %v1407 = vld [vmem:[%s1395 + $0x2c] sm:$0xf]
      %v1408 = vld [vmem:[%s1395 + $0x30] sm:$0xf]
      %v1409 = vld [vmem:[%s1395 + $0x34] sm:$0xf]
      %v1410 = vld [vmem:[%s1395 + $0x38] sm:$0xf]
      %v1411 = vld [vmem:[%s1395 + $0x3c] sm:$0xf]
      %v1412 = vld [vmem:[%s1395 + $0x40] sm:$0xf]
      %v1413 = vld [vmem:[%s1395 + $0x44] sm:$0xf]
      %v1414 = vld [vmem:[%s1395 + $0x48] sm:$0xf]
      %v1415 = vld [vmem:[%s1395 + $0x4c] sm:$0xf]
      %v1416 = vld [vmem:[%s1395 + $0x50] sm:$0xf]
      %v1417 = vld [vmem:[%s1395 + $0x54] sm:$0xf]
      %v1418 = vld [vmem:[%s1395 + $0x58] sm:$0xf]
      %v1419 = vld [vmem:[%s1395 + $0x5c] sm:$0xf]
      %v1420 = vld [vmem:[%s1395 + $0x60] sm:$0xf]
      %v1421 = vld [vmem:[%s1395 + $0x64] sm:$0xf]
      %v1422 = vld [vmem:[%s1395 + $0x68] sm:$0xf]
      %v1423 = vld [vmem:[%s1395 + $0x6c] sm:$0xf]
      %v1424 = vld [vmem:[%s1395 + $0x70] sm:$0xf]
      %v1425 = vld [vmem:[%s1395 + $0x74] sm:$0xf]
      %v1426 = vld [vmem:[%s1395 + $0x78] sm:$0xf]
      %v1427 = vld [vmem:[%s1395 + $0x7c] sm:$0xf]
      %v1428 = vld [vmem:[%s1395 + $0x80] sm:$0xf]
      %v1429 = vld [vmem:[%s1395 + $0x84] sm:$0xf]
      %v1430 = vld [vmem:[%s1395 + $0x88] sm:$0xf]
      %v1431 = vld [vmem:[%s1395 + $0x8c] sm:$0xf]
      %v1432 = vld [vmem:[%s1395 + $0x90] sm:$0xf]
      %v1433 = vld [vmem:[%s1395 + $0x94] sm:$0xf]
      %v1434 = vld [vmem:[%s1395 + $0x98] sm:$0xf]
      %v1435 = vld [vmem:[%s1395 + $0x9c] sm:$0xf]
      %v1436 = vld [vmem:[%s1395 + $0xa0] sm:$0xf]
      %v1437 = vld [vmem:[%s1395 + $0xa4] sm:$0xf]
      %v1438 = vld [vmem:[%s1395 + $0xa8] sm:$0xf]
      %v1439 = vld [vmem:[%s1395 + $0xac] sm:$0xf]
      %v1440 = vld [vmem:[%s1395 + $0xb0] sm:$0xf]
      %v1441 = vld [vmem:[%s1395 + $0xb4] sm:$0xf]
      %v1442 = vld [vmem:[%s1395 + $0xb8] sm:$0xf]
      %v1443 = vld [vmem:[%s1395 + $0xbc] sm:$0xf]
      %v1444 = vld [vmem:[%s1395 + $0xc0] sm:$0xf]
      %v1445 = vld [vmem:[%s1395 + $0xc4] sm:$0xf]
      %v1446 = vld [vmem:[%s1395 + $0xc8] sm:$0xf]
      %v1447 = vld [vmem:[%s1395 + $0xcc] sm:$0xf]
      %v1448 = vld [vmem:[%s1395 + $0xd0] sm:$0xf]
      %v1449 = vld [vmem:[%s1395 + $0xd4] sm:$0xf]
      %v1450 = vld [vmem:[%s1395 + $0xd8] sm:$0xf]
      %v1451 = vld [vmem:[%s1395 + $0xdc] sm:$0xf]
      %v1452 = vld [vmem:[%s1395 + $0xe0] sm:$0xf]
      %v1453 = vld [vmem:[%s1395 + $0xe4] sm:$0xf]
      %v1454 = vld [vmem:[%s1395 + $0xe8] sm:$0xf]
      %v1455 = vld [vmem:[%s1395 + $0xec] sm:$0xf]
      %v1456 = vld [vmem:[%s1395 + $0xf0] sm:$0xf]
      %v1457 = vld [vmem:[%s1395 + $0xf4] sm:$0xf]
      %v1458 = vld [vmem:[%s1395 + $0xf8] sm:$0xf]
      %v1459 = vld [vmem:[%s1395 + $0xfc] sm:$0xf]
      %v1524 = vunpack.c.l.b16 %v1396
      %v1525 = vunpack.c.l.b16 %v1397
      %v1526 = vunpack.c.l.b16 %v1398
      %v1527 = vunpack.c.l.b16 %v1399
      %v1528 = vunpack.c.l.b16 %v1400
      %v1529 = vunpack.c.l.b16 %v1401
      %v1530 = vunpack.c.l.b16 %v1402
      %v1531 = vunpack.c.l.b16 %v1403
      %v1532 = vunpack.c.l.b16 %v1404
      %v1533 = vunpack.c.l.b16 %v1405
      %v1534 = vunpack.c.l.b16 %v1406
      %v1535 = vunpack.c.l.b16 %v1407
      %v1536 = vunpack.c.l.b16 %v1408
      %v1537 = vunpack.c.l.b16 %v1409
      %v1538 = vunpack.c.l.b16 %v1410
      %v1539 = vunpack.c.l.b16 %v1411
      %v1540 = vunpack.c.l.b16 %v1412
      %v1541 = vunpack.c.l.b16 %v1413
      %v1542 = vunpack.c.l.b16 %v1414
      %v1543 = vunpack.c.l.b16 %v1415
      %v1544 = vunpack.c.l.b16 %v1416
      %v1545 = vunpack.c.l.b16 %v1417
      %v1546 = vunpack.c.l.b16 %v1418
      %v1547 = vunpack.c.l.b16 %v1419
      %v1548 = vunpack.c.l.b16 %v1420
      %v1549 = vunpack.c.l.b16 %v1421
      %v1550 = vunpack.c.l.b16 %v1422
      %v1551 = vunpack.c.l.b16 %v1423
      %v1552 = vunpack.c.l.b16 %v1424
      %v1553 = vunpack.c.l.b16 %v1425
      %v1554 = vunpack.c.l.b16 %v1426
      %v1555 = vunpack.c.l.b16 %v1427
      %v1556 = vunpack.c.l.b16 %v1428
      %v1557 = vunpack.c.l.b16 %v1429
      %v1558 = vunpack.c.l.b16 %v1430
      %v1559 = vunpack.c.l.b16 %v1431
      %v1560 = vunpack.c.l.b16 %v1432
      %v1561 = vunpack.c.l.b16 %v1433
      %v1562 = vunpack.c.l.b16 %v1434
      %v1563 = vunpack.c.l.b16 %v1435
      %v1564 = vunpack.c.l.b16 %v1436
      %v1565 = vunpack.c.l.b16 %v1437
      %v1566 = vunpack.c.l.b16 %v1438
      %v1567 = vunpack.c.l.b16 %v1439
      %v1568 = vunpack.c.l.b16 %v1440
      %v1569 = vunpack.c.l.b16 %v1441
      %v1570 = vunpack.c.l.b16 %v1442
      %v1571 = vunpack.c.l.b16 %v1443
      %v1572 = vunpack.c.l.b16 %v1444
      %v1573 = vunpack.c.l.b16 %v1445
      %v1574 = vunpack.c.l.b16 %v1446
      %v1575 = vunpack.c.l.b16 %v1447
      %v1576 = vunpack.c.l.b16 %v1448
      %v1577 = vunpack.c.l.b16 %v1449
      %v1578 = vunpack.c.l.b16 %v1450
      %v1579 = vunpack.c.l.b16 %v1451
      %v1580 = vunpack.c.l.b16 %v1452
      %v1581 = vunpack.c.l.b16 %v1453
      %v1582 = vunpack.c.l.b16 %v1454
      %v1583 = vunpack.c.l.b16 %v1455
      %v1584 = vunpack.c.l.b16 %v1456
      %v1585 = vunpack.c.l.b16 %v1457
      %v1586 = vunpack.c.l.b16 %v1458
      %v1587 = vunpack.c.l.b16 %v1459
      %v1588 = vpack.c.b16 %v1525, %v1524
      %v1589 = vpack.c.b16 %v1527, %v1526
      %v1590 = vpack.c.b16 %v1529, %v1528
      %v1591 = vpack.c.b16 %v1531, %v1530
      %v1592 = vpack.c.b16 %v1533, %v1532
      %v1593 = vpack.c.b16 %v1535, %v1534
      %v1594 = vpack.c.b16 %v1537, %v1536
      %v1595 = vpack.c.b16 %v1539, %v1538
      %v1596 = vpack.c.b16 %v1541, %v1540
      %v1597 = vpack.c.b16 %v1543, %v1542
      %v1598 = vpack.c.b16 %v1545, %v1544
      %v1599 = vpack.c.b16 %v1547, %v1546
      %v1600 = vpack.c.b16 %v1549, %v1548
      %v1601 = vpack.c.b16 %v1551, %v1550
      %v1602 = vpack.c.b16 %v1553, %v1552
      %v1603 = vpack.c.b16 %v1555, %v1554
      %v1604 = vpack.c.b16 %v1557, %v1556
      %v1605 = vpack.c.b16 %v1559, %v1558
      %v1606 = vpack.c.b16 %v1561, %v1560
      %v1607 = vpack.c.b16 %v1563, %v1562
      %v1608 = vpack.c.b16 %v1565, %v1564
      %v1609 = vpack.c.b16 %v1567, %v1566
      %v1610 = vpack.c.b16 %v1569, %v1568
      %v1611 = vpack.c.b16 %v1571, %v1570
      %v1612 = vpack.c.b16 %v1573, %v1572
      %v1613 = vpack.c.b16 %v1575, %v1574
      %v1614 = vpack.c.b16 %v1577, %v1576
      %v1615 = vpack.c.b16 %v1579, %v1578
      %v1616 = vpack.c.b16 %v1581, %v1580
      %v1617 = vpack.c.b16 %v1583, %v1582
      %v1618 = vpack.c.b16 %v1585, %v1584
      %v1619 = vpack.c.b16 %v1587, %v1586
      %1652 = vmatprep.subr.bf16.mxu0 0
      %1653 = vmatpush1.bf16.msra.mxu0 %v1588
      %1654 = vmatprep.subr.bf16.mxu0 0
      %1655 = vmatpush1.bf16.msra.mxu0 %v1589
      %1656 = vmatprep.subr.bf16.mxu0 0
      %1657 = vmatpush1.bf16.msra.mxu0 %v1590
      %1658 = vmatprep.subr.bf16.mxu0 0
      %1659 = vmatpush1.bf16.msra.mxu0 %v1591
      %1660 = vmatprep.subr.bf16.mxu0 0
      %1661 = vmatpush1.bf16.msra.mxu0 %v1592
      %1662 = vmatprep.subr.bf16.mxu0 0
      %1663 = vmatpush1.bf16.msra.mxu0 %v1593
      %1664 = vmatprep.subr.bf16.mxu0 0
      %1665 = vmatpush1.bf16.msra.mxu0 %v1594
      %1666 = vmatprep.subr.bf16.mxu0 0
      %1667 = vmatpush1.bf16.msra.mxu0 %v1595
      %1668 = vmatprep.subr.bf16.mxu0 0
      %1669 = vmatpush1.bf16.msra.mxu0 %v1596
      %1670 = vmatprep.subr.bf16.mxu0 0
      %1671 = vmatpush1.bf16.msra.mxu0 %v1597
      %1672 = vmatprep.subr.bf16.mxu0 0
      %1673 = vmatpush1.bf16.msra.mxu0 %v1598
      %1674 = vmatprep.subr.bf16.mxu0 0
      %1675 = vmatpush1.bf16.msra.mxu0 %v1599
      %1676 = vmatprep.subr.bf16.mxu0 0
      %1677 = vmatpush1.bf16.msra.mxu0 %v1600
      %1678 = vmatprep.subr.bf16.mxu0 0
      %1679 = vmatpush1.bf16.msra.mxu0 %v1601
      %1680 = vmatprep.subr.bf16.mxu0 0
      %1681 = vmatpush1.bf16.msra.mxu0 %v1602
      %1682 = vmatprep.subr.bf16.mxu0 0
      %1683 = vmatpush1.bf16.msra.mxu0 %v1603
      %1684 = vmatprep.mubr.bf16.mxu0 %v679
      %1685 = vmatmul.mubr.bf16.gmra.mrb[0].mxu0 %v678
      %v1686 = vpop.f32.mrb[0].mxu0
      %v1687 = vadd.f32 0.0, %v1686
      %v1688 = vpop.f32.mrb[0].mxu0
      %v1689 = vpop.f32.mrb[0].mxu0
      %v1690 = vadd.f32 0.0, %v1689
      %v1691 = vpop.f32.mrb[0].mxu0
      %1692 = vmatprep.mubr.bf16.mxu0 %v683
      %1693 = vmatmul.mubr.bf16.gmra.mrb[0].mxu0 %v682
      %v1694 = vpop.f32.mrb[0].mxu0
      %v1695 = vadd.f32 0.0, %v1694
      %v1696 = vpop.f32.mrb[0].mxu0
      %v1697 = vpop.f32.mrb[0].mxu0
      %v1698 = vadd.f32 0.0, %v1697
      %v1699 = vpop.f32.mrb[0].mxu0
      %1700 = vdwg.mxu0
      %1701 = vmatprep.subr.bf16.mxu0 0
      %1702 = vmatpush1.bf16.msra.mxu0 %v1604
      %1703 = vmatprep.subr.bf16.mxu0 0
      %1704 = vmatpush1.bf16.msra.mxu0 %v1605
      %1705 = vmatprep.subr.bf16.mxu0 0
      %1706 = vmatpush1.bf16.msra.mxu0 %v1606
      %1707 = vmatprep.subr.bf16.mxu0 0
      %1708 = vmatpush1.bf16.msra.mxu0 %v1607
      %1709 = vmatprep.subr.bf16.mxu0 0
      %1710 = vmatpush1.bf16.msra.mxu0 %v1608
      %1711 = vmatprep.subr.bf16.mxu0 0
      %1712 = vmatpush1.bf16.msra.mxu0 %v1609
      %1713 = vmatprep.subr.bf16.mxu0 0
      %1714 = vmatpush1.bf16.msra.mxu0 %v1610
      %1715 = vmatprep.subr.bf16.mxu0 0
      %1716 = vmatpush1.bf16.msra.mxu0 %v1611
      %1717 = vmatprep.subr.bf16.mxu0 0
      %1718 = vmatpush1.bf16.msra.mxu0 %v1612
      %1719 = vmatprep.subr.bf16.mxu0 0
      %1720 = vmatpush1.bf16.msra.mxu0 %v1613
      %1721 = vmatprep.subr.bf16.mxu0 0
      %1722 = vmatpush1.bf16.msra.mxu0 %v1614
      %1723 = vmatprep.subr.bf16.mxu0 0
      %1724 = vmatpush1.bf16.msra.mxu0 %v1615
      %1725 = vmatprep.subr.bf16.mxu0 0
      %1726 = vmatpush1.bf16.msra.mxu0 %v1616
      %1727 = vmatprep.subr.bf16.mxu0 0
      %1728 = vmatpush1.bf16.msra.mxu0 %v1617
      %1729 = vmatprep.subr.bf16.mxu0 0
      %1730 = vmatpush1.bf16.msra.mxu0 %v1618
      %1731 = vmatprep.subr.bf16.mxu0 0
      %1732 = vmatpush1.bf16.msra.mxu0 %v1619
      %1733 = vmatprep.mubr.bf16.mxu0 %v681
      %1734 = vmatmul.mubr.bf16.gmra.mrb[0].mxu0 %v680
      %v1735 = vpop.f32.mrb[0].mxu0
      %v1736 = vadd.f32 %v1687, %v1735
      %v1737 = vpop.f32.mrb[0].mxu0
      %v1738 = vpop.f32.mrb[0].mxu0
      %v1739 = vadd.f32 %v1690, %v1738
      %v1740 = vpop.f32.mrb[0].mxu0
      %1741 = vmatprep.mubr.bf16.mxu0 %v685
      %1742 = vmatmul.mubr.bf16.gmra.mrb[0].mxu0 %v684
      %v1743 = vpop.f32.mrb[0].mxu0
      %v1744 = vadd.f32 %v1695, %v1743
      %v1745 = vpop.f32.mrb[0].mxu0
      %v1746 = vpop.f32.mrb[0].mxu0
      %v1747 = vadd.f32 %v1698, %v1746
      %v1748 = vpop.f32.mrb[0].mxu0
      %1749 = vdwg.mxu0
      %s1750 = scalar_lea.vmem %s1, 768
      %v1751 = vld [vmem:[%s1750] sm:$0xf]
      %v1752 = vld [vmem:[%s1750 + $0x4] sm:$0xf]
      %v1753 = vld [vmem:[%s1750 + $0x8] sm:$0xf]
      %v1754 = vld [vmem:[%s1750 + $0xc] sm:$0xf]
      %v1755 = vld [vmem:[%s1750 + $0x10] sm:$0xf]
      %v1756 = vld [vmem:[%s1750 + $0x14] sm:$0xf]
      %v1757 = vld [vmem:[%s1750 + $0x18] sm:$0xf]
      %v1758 = vld [vmem:[%s1750 + $0x1c] sm:$0xf]
      %v1759 = vld [vmem:[%s1750 + $0x20] sm:$0xf]
      %v1760 = vld [vmem:[%s1750 + $0x24] sm:$0xf]
      %v1761 = vld [vmem:[%s1750 + $0x28] sm:$0xf]
      %v1762 = vld [vmem:[%s1750 + $0x2c] sm:$0xf]
      %v1763 = vld [vmem:[%s1750 + $0x30] sm:$0xf]
      %v1764 = vld [vmem:[%s1750 + $0x34] sm:$0xf]
      %v1765 = vld [vmem:[%s1750 + $0x38] sm:$0xf]
      %v1766 = vld [vmem:[%s1750 + $0x3c] sm:$0xf]
      %v1767 = vld [vmem:[%s1750 + $0x40] sm:$0xf]
      %v1768 = vld [vmem:[%s1750 + $0x44] sm:$0xf]
      %v1769 = vld [vmem:[%s1750 + $0x48] sm:$0xf]
      %v1770 = vld [vmem:[%s1750 + $0x4c] sm:$0xf]
      %v1771 = vld [vmem:[%s1750 + $0x50] sm:$0xf]
      %v1772 = vld [vmem:[%s1750 + $0x54] sm:$0xf]
      %v1773 = vld [vmem:[%s1750 + $0x58] sm:$0xf]
      %v1774 = vld [vmem:[%s1750 + $0x5c] sm:$0xf]
      %v1775 = vld [vmem:[%s1750 + $0x60] sm:$0xf]
      %v1776 = vld [vmem:[%s1750 + $0x64] sm:$0xf]
      %v1777 = vld [vmem:[%s1750 + $0x68] sm:$0xf]
      %v1778 = vld [vmem:[%s1750 + $0x6c] sm:$0xf]
      %v1779 = vld [vmem:[%s1750 + $0x70] sm:$0xf]
      %v1780 = vld [vmem:[%s1750 + $0x74] sm:$0xf]
      %v1781 = vld [vmem:[%s1750 + $0x78] sm:$0xf]
      %v1782 = vld [vmem:[%s1750 + $0x7c] sm:$0xf]
      %v1783 = vld [vmem:[%s1750 + $0x80] sm:$0xf]
      %v1784 = vld [vmem:[%s1750 + $0x84] sm:$0xf]
      %v1785 = vld [vmem:[%s1750 + $0x88] sm:$0xf]
      %v1786 = vld [vmem:[%s1750 + $0x8c] sm:$0xf]
      %v1787 = vld [vmem:[%s1750 + $0x90] sm:$0xf]
      %v1788 = vld [vmem:[%s1750 + $0x94] sm:$0xf]
      %v1789 = vld [vmem:[%s1750 + $0x98] sm:$0xf]
      %v1790 = vld [vmem:[%s1750 + $0x9c] sm:$0xf]
      %v1791 = vld [vmem:[%s1750 + $0xa0] sm:$0xf]
      %v1792 = vld [vmem:[%s1750 + $0xa4] sm:$0xf]
      %v1793 = vld [vmem:[%s1750 + $0xa8] sm:$0xf]
      %v1794 = vld [vmem:[%s1750 + $0xac] sm:$0xf]
      %v1795 = vld [vmem:[%s1750 + $0xb0] sm:$0xf]
      %v1796 = vld [vmem:[%s1750 + $0xb4] sm:$0xf]
      %v1797 = vld [vmem:[%s1750 + $0xb8] sm:$0xf]
      %v1798 = vld [vmem:[%s1750 + $0xbc] sm:$0xf]
      %v1799 = vld [vmem:[%s1750 + $0xc0] sm:$0xf]
      %v1800 = vld [vmem:[%s1750 + $0xc4] sm:$0xf]
      %v1801 = vld [vmem:[%s1750 + $0xc8] sm:$0xf]
      %v1802 = vld [vmem:[%s1750 + $0xcc] sm:$0xf]
      %v1803 = vld [vmem:[%s1750 + $0xd0] sm:$0xf]
      %v1804 = vld [vmem:[%s1750 + $0xd4] sm:$0xf]
      %v1805 = vld [vmem:[%s1750 + $0xd8] sm:$0xf]
      %v1806 = vld [vmem:[%s1750 + $0xdc] sm:$0xf]
      %v1807 = vld [vmem:[%s1750 + $0xe0] sm:$0xf]
      %v1808 = vld [vmem:[%s1750 + $0xe4] sm:$0xf]
      %v1809 = vld [vmem:[%s1750 + $0xe8] sm:$0xf]
      %v1810 = vld [vmem:[%s1750 + $0xec] sm:$0xf]
      %v1811 = vld [vmem:[%s1750 + $0xf0] sm:$0xf]
      %v1812 = vld [vmem:[%s1750 + $0xf4] sm:$0xf]
      %v1813 = vld [vmem:[%s1750 + $0xf8] sm:$0xf]
      %v1814 = vld [vmem:[%s1750 + $0xfc] sm:$0xf]
      %v1879 = vunpack.c.l.b16 %v1751
      %v1880 = vunpack.c.l.b16 %v1752
      %v1881 = vunpack.c.l.b16 %v1753
      %v1882 = vunpack.c.l.b16 %v1754
      %v1883 = vunpack.c.l.b16 %v1755
      %v1884 = vunpack.c.l.b16 %v1756
      %v1885 = vunpack.c.l.b16 %v1757
      %v1886 = vunpack.c.l.b16 %v1758
      %v1887 = vunpack.c.l.b16 %v1759
      %v1888 = vunpack.c.l.b16 %v1760
      %v1889 = vunpack.c.l.b16 %v1761
      %v1890 = vunpack.c.l.b16 %v1762
      %v1891 = vunpack.c.l.b16 %v1763
      %v1892 = vunpack.c.l.b16 %v1764
      %v1893 = vunpack.c.l.b16 %v1765
      %v1894 = vunpack.c.l.b16 %v1766
      %v1895 = vunpack.c.l.b16 %v1767
      %v1896 = vunpack.c.l.b16 %v1768
      %v1897 = vunpack.c.l.b16 %v1769
      %v1898 = vunpack.c.l.b16 %v1770
      %v1899 = vunpack.c.l.b16 %v1771
      %v1900 = vunpack.c.l.b16 %v1772
      %v1901 = vunpack.c.l.b16 %v1773
      %v1902 = vunpack.c.l.b16 %v1774
      %v1903 = vunpack.c.l.b16 %v1775
      %v1904 = vunpack.c.l.b16 %v1776
      %v1905 = vunpack.c.l.b16 %v1777
      %v1906 = vunpack.c.l.b16 %v1778
      %v1907 = vunpack.c.l.b16 %v1779
      %v1908 = vunpack.c.l.b16 %v1780
      %v1909 = vunpack.c.l.b16 %v1781
      %v1910 = vunpack.c.l.b16 %v1782
      %v1911 = vunpack.c.l.b16 %v1783
      %v1912 = vunpack.c.l.b16 %v1784
      %v1913 = vunpack.c.l.b16 %v1785
      %v1914 = vunpack.c.l.b16 %v1786
      %v1915 = vunpack.c.l.b16 %v1787
      %v1916 = vunpack.c.l.b16 %v1788
      %v1917 = vunpack.c.l.b16 %v1789
      %v1918 = vunpack.c.l.b16 %v1790
      %v1919 = vunpack.c.l.b16 %v1791
      %v1920 = vunpack.c.l.b16 %v1792
      %v1921 = vunpack.c.l.b16 %v1793
      %v1922 = vunpack.c.l.b16 %v1794
      %v1923 = vunpack.c.l.b16 %v1795
      %v1924 = vunpack.c.l.b16 %v1796
      %v1925 = vunpack.c.l.b16 %v1797
      %v1926 = vunpack.c.l.b16 %v1798
      %v1927 = vunpack.c.l.b16 %v1799
      %v1928 = vunpack.c.l.b16 %v1800
      %v1929 = vunpack.c.l.b16 %v1801
      %v1930 = vunpack.c.l.b16 %v1802
      %v1931 = vunpack.c.l.b16 %v1803
      %v1932 = vunpack.c.l.b16 %v1804
      %v1933 = vunpack.c.l.b16 %v1805
      %v1934 = vunpack.c.l.b16 %v1806
      %v1935 = vunpack.c.l.b16 %v1807
      %v1936 = vunpack.c.l.b16 %v1808
      %v1937 = vunpack.c.l.b16 %v1809
      %v1938 = vunpack.c.l.b16 %v1810
      %v1939 = vunpack.c.l.b16 %v1811
      %v1940 = vunpack.c.l.b16 %v1812
      %v1941 = vunpack.c.l.b16 %v1813
      %v1942 = vunpack.c.l.b16 %v1814
      %v1943 = vpack.c.b16 %v1880, %v1879
      %v1944 = vpack.c.b16 %v1882, %v1881
      %v1945 = vpack.c.b16 %v1884, %v1883
      %v1946 = vpack.c.b16 %v1886, %v1885
      %v1947 = vpack.c.b16 %v1888, %v1887
      %v1948 = vpack.c.b16 %v1890, %v1889
      %v1949 = vpack.c.b16 %v1892, %v1891
      %v1950 = vpack.c.b16 %v1894, %v1893
      %v1951 = vpack.c.b16 %v1896, %v1895
      %v1952 = vpack.c.b16 %v1898, %v1897
      %v1953 = vpack.c.b16 %v1900, %v1899
      %v1954 = vpack.c.b16 %v1902, %v1901
      %v1955 = vpack.c.b16 %v1904, %v1903
      %v1956 = vpack.c.b16 %v1906, %v1905
      %v1957 = vpack.c.b16 %v1908, %v1907
      %v1958 = vpack.c.b16 %v1910, %v1909
      %v1959 = vpack.c.b16 %v1912, %v1911
      %v1960 = vpack.c.b16 %v1914, %v1913
      %v1961 = vpack.c.b16 %v1916, %v1915
      %v1962 = vpack.c.b16 %v1918, %v1917
      %v1963 = vpack.c.b16 %v1920, %v1919
      %v1964 = vpack.c.b16 %v1922, %v1921
      %v1965 = vpack.c.b16 %v1924, %v1923
      %v1966 = vpack.c.b16 %v1926, %v1925
      %v1967 = vpack.c.b16 %v1928, %v1927
      %v1968 = vpack.c.b16 %v1930, %v1929
      %v1969 = vpack.c.b16 %v1932, %v1931
      %v1970 = vpack.c.b16 %v1934, %v1933
      %v1971 = vpack.c.b16 %v1936, %v1935
      %v1972 = vpack.c.b16 %v1938, %v1937
      %v1973 = vpack.c.b16 %v1940, %v1939
      %v1974 = vpack.c.b16 %v1942, %v1941
      %2007 = vmatprep.subr.bf16.mxu0 0
      %2008 = vmatpush1.bf16.msra.mxu0 %v1943
      %2009 = vmatprep.subr.bf16.mxu0 0
      %2010 = vmatpush1.bf16.msra.mxu0 %v1944
      %2011 = vmatprep.subr.bf16.mxu0 0
      %2012 = vmatpush1.bf16.msra.mxu0 %v1945
      %2013 = vmatprep.subr.bf16.mxu0 0
      %2014 = vmatpush1.bf16.msra.mxu0 %v1946
      %2015 = vmatprep.subr.bf16.mxu0 0
      %2016 = vmatpush1.bf16.msra.mxu0 %v1947
      %2017 = vmatprep.subr.bf16.mxu0 0
      %2018 = vmatpush1.bf16.msra.mxu0 %v1948
      %2019 = vmatprep.subr.bf16.mxu0 0
      %2020 = vmatpush1.bf16.msra.mxu0 %v1949
      %2021 = vmatprep.subr.bf16.mxu0 0
      %2022 = vmatpush1.bf16.msra.mxu0 %v1950
      %2023 = vmatprep.subr.bf16.mxu0 0
      %2024 = vmatpush1.bf16.msra.mxu0 %v1951
      %2025 = vmatprep.subr.bf16.mxu0 0
      %2026 = vmatpush1.bf16.msra.mxu0 %v1952
      %2027 = vmatprep.subr.bf16.mxu0 0
      %2028 = vmatpush1.bf16.msra.mxu0 %v1953
      %2029 = vmatprep.subr.bf16.mxu0 0
      %2030 = vmatpush1.bf16.msra.mxu0 %v1954
      %2031 = vmatprep.subr.bf16.mxu0 0
      %2032 = vmatpush1.bf16.msra.mxu0 %v1955
      %2033 = vmatprep.subr.bf16.mxu0 0
      %2034 = vmatpush1.bf16.msra.mxu0 %v1956
      %2035 = vmatprep.subr.bf16.mxu0 0
      %2036 = vmatpush1.bf16.msra.mxu0 %v1957
      %2037 = vmatprep.subr.bf16.mxu0 0
      %2038 = vmatpush1.bf16.msra.mxu0 %v1958
      %2039 = vmatprep.mubr.bf16.mxu0 %v679
      %2040 = vmatmul.mubr.bf16.gmra.mrb[0].mxu0 %v678
      %v2041 = vpop.f32.mrb[0].mxu0
      %v2042 = vadd.f32 0.0, %v2041
      %v2043 = vpop.f32.mrb[0].mxu0
      %v2044 = vpop.f32.mrb[0].mxu0
      %v2045 = vadd.f32 0.0, %v2044
      %v2046 = vpop.f32.mrb[0].mxu0
      %2047 = vmatprep.mubr.bf16.mxu0 %v683
      %2048 = vmatmul.mubr.bf16.gmra.mrb[0].mxu0 %v682
      %v2049 = vpop.f32.mrb[0].mxu0
      %v2050 = vadd.f32 0.0, %v2049
      %v2051 = vpop.f32.mrb[0].mxu0
      %v2052 = vpop.f32.mrb[0].mxu0
      %v2053 = vadd.f32 0.0, %v2052
      %v2054 = vpop.f32.mrb[0].mxu0
      %2055 = vdwg.mxu0
      %2056 = vmatprep.subr.bf16.mxu0 0
      %2057 = vmatpush1.bf16.msra.mxu0 %v1959
      %2058 = vmatprep.subr.bf16.mxu0 0
      %2059 = vmatpush1.bf16.msra.mxu0 %v1960
      %2060 = vmatprep.subr.bf16.mxu0 0
      %2061 = vmatpush1.bf16.msra.mxu0 %v1961
      %2062 = vmatprep.subr.bf16.mxu0 0
      %2063 = vmatpush1.bf16.msra.mxu0 %v1962
      %2064 = vmatprep.subr.bf16.mxu0 0
      %2065 = vmatpush1.bf16.msra.mxu0 %v1963
      %2066 = vmatprep.subr.bf16.mxu0 0
      %2067 = vmatpush1.bf16.msra.mxu0 %v1964
      %2068 = vmatprep.subr.bf16.mxu0 0
      %2069 = vmatpush1.bf16.msra.mxu0 %v1965
      %2070 = vmatprep.subr.bf16.mxu0 0
      %2071 = vmatpush1.bf16.msra.mxu0 %v1966
      %2072 = vmatprep.subr.bf16.mxu0 0
      %2073 = vmatpush1.bf16.msra.mxu0 %v1967
      %2074 = vmatprep.subr.bf16.mxu0 0
      %2075 = vmatpush1.bf16.msra.mxu0 %v1968
      %2076 = vmatprep.subr.bf16.mxu0 0
      %2077 = vmatpush1.bf16.msra.mxu0 %v1969
      %2078 = vmatprep.subr.bf16.mxu0 0
      %2079 = vmatpush1.bf16.msra.mxu0 %v1970
      %2080 = vmatprep.subr.bf16.mxu0 0
      %2081 = vmatpush1.bf16.msra.mxu0 %v1971
      %2082 = vmatprep.subr.bf16.mxu0 0
      %2083 = vmatpush1.bf16.msra.mxu0 %v1972
      %2084 = vmatprep.subr.bf16.mxu0 0
      %2085 = vmatpush1.bf16.msra.mxu0 %v1973
      %2086 = vmatprep.subr.bf16.mxu0 0
      %2087 = vmatpush1.bf16.msra.mxu0 %v1974
      %2088 = vmatprep.mubr.bf16.mxu0 %v681
      %2089 = vmatmul.mubr.bf16.gmra.mrb[0].mxu0 %v680
      %v2090 = vpop.f32.mrb[0].mxu0
      %v2091 = vadd.f32 %v2042, %v2090
      %v2092 = vpop.f32.mrb[0].mxu0
      %v2093 = vpop.f32.mrb[0].mxu0
      %v2094 = vadd.f32 %v2045, %v2093
      %v2095 = vpop.f32.mrb[0].mxu0
      %2096 = vmatprep.mubr.bf16.mxu0 %v685
      %2097 = vmatmul.mubr.bf16.gmra.mrb[0].mxu0 %v684
      %v2098 = vpop.f32.mrb[0].mxu0
      %v2099 = vadd.f32 %v2050, %v2098
      %v2100 = vpop.f32.mrb[0].mxu0
      %v2101 = vpop.f32.mrb[0].mxu0
      %v2102 = vadd.f32 %v2053, %v2101
      %v2103 = vpop.f32.mrb[0].mxu0
      %2104 = vdwg.mxu0
      %v2105 = vld [vmem:[%s437] sm:$0xf]
      %v2106 = vld [vmem:[%s437 + $0x4] sm:$0xf]
      %v2107 = vld [vmem:[%s437 + $0x8] sm:$0xf]
      %v2108 = vld [vmem:[%s437 + $0xc] sm:$0xf]
      %v2109 = vld [vmem:[%s437 + $0x10] sm:$0xf]
      %v2110 = vld [vmem:[%s437 + $0x14] sm:$0xf]
      %v2111 = vld [vmem:[%s437 + $0x18] sm:$0xf]
      %v2112 = vld [vmem:[%s437 + $0x1c] sm:$0xf]
      %v2113 = vld [vmem:[%s442] sm:$0xff]
      %v2114 = vld [vmem:[%s442 + $0x8] sm:$0xff]
      %v2115 = vld [vmem:[%s442 + $0x10] sm:$0xff]
      %v2116 = vld [vmem:[%s442 + $0x18] sm:$0xff]
      %v2117 = vld [vmem:[%s442 + $0x20] sm:$0xff]
      %v2118 = vld [vmem:[%s442 + $0x28] sm:$0xff]
      %v2119 = vld [vmem:[%s442 + $0x30] sm:$0xff]
      %v2120 = vld [vmem:[%s442 + $0x38] sm:$0xff]
      %v2121 = vpack.c.bf16 %v1029, %v1026
      %v2122 = vpack.c.bf16 %v1037, %v1034
      %v2123 = vpack.c.bf16 %v1384, %v1381
      %v2124 = vpack.c.bf16 %v1392, %v1389
      %v2125 = vpack.c.bf16 %v1739, %v1736
      %v2126 = vpack.c.bf16 %v1747, %v1744
      %v2127 = vpack.c.bf16 %v2094, %v2091
      %v2128 = vpack.c.bf16 %v2102, %v2099
      %2130 = vset.pattern.permute.xlu0 0
      %2131 = vperm.xlu0 %2130, %v2113
      %v2132 = vpop.permute.xlu0 %2131
      %2135 = vset.pattern.permute.xlu0 0
      %2136 = vperm.xlu0 %2135, %v2114
      %v2137 = vpop.permute.xlu0 %2136
      %2140 = vset.pattern.permute.xlu0 0
      %2141 = vperm.xlu0 %2140, %v2115
      %v2142 = vpop.permute.xlu0 %2141
      %2145 = vset.pattern.permute.xlu0 0
      %2146 = vperm.xlu0 %2145, %v2116
      %v2147 = vpop.permute.xlu0 %2146
      %2150 = vset.pattern.permute.xlu0 0
      %2151 = vperm.xlu0 %2150, %v2117
      %v2152 = vpop.permute.xlu0 %2151
      %2155 = vset.pattern.permute.xlu0 0
      %2156 = vperm.xlu0 %2155, %v2118
      %v2157 = vpop.permute.xlu0 %2156
      %2160 = vset.pattern.permute.xlu0 0
      %2161 = vperm.xlu0 %2160, %v2119
      %v2162 = vpop.permute.xlu0 %2161
      %2165 = vset.pattern.permute.xlu0 0
      %2166 = vperm.xlu0 %2165, %v2120
      %v2167 = vpop.permute.xlu0 %2166
      %v2177 = vunpack.c.l.b16 %v2105
      %v2178 = vunpack.c.l.b16 %v2106
      %v2179 = vunpack.c.l.b16 %v2107
      %v2180 = vunpack.c.l.b16 %v2108
      %v2181 = vunpack.c.l.b16 %v2109
      %v2182 = vunpack.c.l.b16 %v2110
      %v2183 = vunpack.c.l.b16 %v2111
      %v2184 = vunpack.c.l.b16 %v2112
      %v2185 = vpack.c.b16 %v2178, %v2177
      %v2186 = vpack.c.b16 %v2180, %v2179
      %v2187 = vpack.c.b16 %v2182, %v2181
      %v2188 = vpack.c.b16 %v2184, %v2183
      %2193 = vmatprep.subr.bf16.mxu0 0
      %2194 = vmatpush1.bf16.msra.mxu0 %v2121
      %2195 = vmatprep.subr.bf16.mxu0 0
      %2196 = vmatpush1.bf16.msra.mxu0 %v2122
      %2197 = vmatprep.subr.bf16.mxu0 0
      %2198 = vmatpush1.bf16.msra.mxu0 %v2123
      %2199 = vmatprep.subr.bf16.mxu0 0
      %2200 = vmatpush1.bf16.msra.mxu0 %v2124
      %2201 = vmatprep.subr.bf16.mxu0 0
      %2202 = vmatpush1.bf16.msra.mxu0 %v2125
      %2203 = vmatprep.subr.bf16.mxu0 0
      %2204 = vmatpush1.bf16.msra.mxu0 %v2126
      %2205 = vmatprep.subr.bf16.mxu0 0
      %2206 = vmatpush1.bf16.msra.mxu0 %v2127
      %2207 = vmatprep.subr.bf16.mxu0 0
      %2208 = vmatpush1.bf16.msra.mxu0 %v2128
      %2209 = vmatprep.subr.bf16.mxu0 0
      %2210 = vmatpush1.bf16.msra.mxu0 0
      %2211 = vmatprep.subr.bf16.mxu0 0
      %2212 = vmatpush1.bf16.msra.mxu0 0
      %2213 = vmatprep.subr.bf16.mxu0 0
      %2214 = vmatpush1.bf16.msra.mxu0 0
      %2215 = vmatprep.subr.bf16.mxu0 0
      %2216 = vmatpush1.bf16.msra.mxu0 0
      %2217 = vmatprep.subr.bf16.mxu0 0
      %2218 = vmatpush1.bf16.msra.mxu0 0
      %2219 = vmatprep.subr.bf16.mxu0 0
      %2220 = vmatpush1.bf16.msra.mxu0 0
      %2221 = vmatprep.subr.bf16.mxu0 0
      %2222 = vmatpush1.bf16.msra.mxu0 0
      %2223 = vmatprep.subr.bf16.mxu0 0
      %2224 = vmatpush1.bf16.msra.mxu0 0
      %2225 = vmatprep.mubr.bf16.mxu0 0
      %2226 = vmatmul.mubr.bf16.gmra.mrb[0].mxu0 %v2185
      %v2227 = vpop.f32.mrb[0].mxu0
      %v2228 = vadd.f32 %v2132, %v2227
      %v2229 = vpop.f32.mrb[0].mxu0
      %v2230 = vpop.f32.mrb[0].mxu0
      %v2231 = vadd.f32 %v2137, %v2230
      %v2232 = vpop.f32.mrb[0].mxu0
      %2233 = vmatprep.mubr.bf16.mxu0 0
      %2234 = vmatmul.mubr.bf16.gmra.mrb[0].mxu0 %v2186
      %v2235 = vpop.f32.mrb[0].mxu0
      %v2236 = vadd.f32 %v2142, %v2235
      %v2237 = vpop.f32.mrb[0].mxu0
      %v2238 = vpop.f32.mrb[0].mxu0
      %v2239 = vadd.f32 %v2147, %v2238
      %v2240 = vpop.f32.mrb[0].mxu0
      %2241 = vmatprep.mubr.bf16.mxu0 0
      %2242 = vmatmul.mubr.bf16.gmra.mrb[0].mxu0 %v2187
      %v2243 = vpop.f32.mrb[0].mxu0
      %v2244 = vadd.f32 %v2152, %v2243
      %v2245 = vpop.f32.mrb[0].mxu0
      %v2246 = vpop.f32.mrb[0].mxu0
      %v2247 = vadd.f32 %v2157, %v2246
      %v2248 = vpop.f32.mrb[0].mxu0
      %2249 = vmatprep.mubr.bf16.mxu0 0
      %2250 = vmatmul.mubr.bf16.gmra.mrb[0].mxu0 %v2188
      %v2251 = vpop.f32.mrb[0].mxu0
      %v2252 = vadd.f32 %v2162, %v2251
      %v2253 = vpop.f32.mrb[0].mxu0
      %v2254 = vpop.f32.mrb[0].mxu0
      %v2255 = vadd.f32 %v2167, %v2254
      %v2256 = vpop.f32.mrb[0].mxu0
      %2257 = vdwg.mxu0
      %v2258 = vmax.f32 %v2228, 0.0
      %v2259 = vmax.f32 %v2231, 0.0
      %v2260 = vmax.f32 %v2236, 0.0
      %v2261 = vmax.f32 %v2239, 0.0
      %v2262 = vmax.f32 %v2244, 0.0
      %v2263 = vmax.f32 %v2247, 0.0
      %v2264 = vmax.f32 %v2252, 0.0
      %v2265 = vmax.f32 %v2255, 0.0
      %v2266 = vld [vmem:[%s447] sm:$0xf]
      %v2267 = vld [vmem:[%s447 + $0x4] sm:$0xf]
      %v2268 = vld [vmem:[%s447 + $0x8] sm:$0xf]
      %v2269 = vld [vmem:[%s447 + $0xc] sm:$0xf]
      %v2270 = vld [vmem:[%s447 + $0x10] sm:$0xf]
      %v2271 = vld [vmem:[%s447 + $0x14] sm:$0xf]
      %v2272 = vld [vmem:[%s447 + $0x18] sm:$0xf]
      %v2273 = vld [vmem:[%s447 + $0x1c] sm:$0xf]
      %v2274 = vld [vmem:[%s447 + $0x20] sm:$0xf]
      %v2275 = vld [vmem:[%s447 + $0x24] sm:$0xf]
      %v2276 = vld [vmem:[%s447 + $0x28] sm:$0xf]
      %v2277 = vld [vmem:[%s447 + $0x2c] sm:$0xf]
      %v2278 = vld [vmem:[%s447 + $0x30] sm:$0xf]
      %v2279 = vld [vmem:[%s447 + $0x34] sm:$0xf]
      %v2280 = vld [vmem:[%s447 + $0x38] sm:$0xf]
      %v2281 = vld [vmem:[%s447 + $0x3c] sm:$0xf]
      %v2282 = vld [vmem:[%s452] sm:$0xff]
      %v2283 = vld [vmem:[%s452 + $0x8] sm:$0xff]
      %v2284 = vld [vmem:[%s452 + $0x10] sm:$0xff]
      %v2285 = vld [vmem:[%s452 + $0x18] sm:$0xff]
      %v2286 = vld [vmem:[%s452 + $0x20] sm:$0xff]
      %v2287 = vld [vmem:[%s452 + $0x28] sm:$0xff]
      %v2288 = vld [vmem:[%s452 + $0x30] sm:$0xff]
      %v2289 = vld [vmem:[%s452 + $0x38] sm:$0xff]
      %v2290 = vld [vmem:[%s452 + $0x40] sm:$0xff]
      %v2291 = vld [vmem:[%s452 + $0x48] sm:$0xff]
      %v2292 = vld [vmem:[%s452 + $0x50] sm:$0xff]
      %v2293 = vld [vmem:[%s452 + $0x58] sm:$0xff]
      %v2294 = vld [vmem:[%s452 + $0x60] sm:$0xff]
      %v2295 = vld [vmem:[%s452 + $0x68] sm:$0xff]
      %v2296 = vld [vmem:[%s452 + $0x70] sm:$0xff]
      %v2297 = vld [vmem:[%s452 + $0x78] sm:$0xff]
      %v2298 = vpack.c.bf16 %v2259, %v2258
      %v2299 = vpack.c.bf16 %v2261, %v2260
      %v2300 = vpack.c.bf16 %v2263, %v2262
      %v2301 = vpack.c.bf16 %v2265, %v2264
      %2303 = vset.pattern.permute.xlu0 0
      %2304 = vperm.xlu0 %2303, %v2282
      %v2305 = vpop.permute.xlu0 %2304
      %2308 = vset.pattern.permute.xlu0 0
      %2309 = vperm.xlu0 %2308, %v2283
      %v2310 = vpop.permute.xlu0 %2309
      %2313 = vset.pattern.permute.xlu0 0
      %2314 = vperm.xlu0 %2313, %v2284
      %v2315 = vpop.permute.xlu0 %2314
      %2318 = vset.pattern.permute.xlu0 0
      %2319 = vperm.xlu0 %2318, %v2285
      %v2320 = vpop.permute.xlu0 %2319
      %2323 = vset.pattern.permute.xlu0 0
      %2324 = vperm.xlu0 %2323, %v2286
      %v2325 = vpop.permute.xlu0 %2324
      %2328 = vset.pattern.permute.xlu0 0
      %2329 = vperm.xlu0 %2328, %v2287
      %v2330 = vpop.permute.xlu0 %2329
      %2333 = vset.pattern.permute.xlu0 0
      %2334 = vperm.xlu0 %2333, %v2288
      %v2335 = vpop.permute.xlu0 %2334
      %2338 = vset.pattern.permute.xlu0 0
      %2339 = vperm.xlu0 %2338, %v2289
      %v2340 = vpop.permute.xlu0 %2339
      %2343 = vset.pattern.permute.xlu0 0
      %2344 = vperm.xlu0 %2343, %v2290
      %v2345 = vpop.permute.xlu0 %2344
      %2348 = vset.pattern.permute.xlu0 0
      %2349 = vperm.xlu0 %2348, %v2291
      %v2350 = vpop.permute.xlu0 %2349
      %2353 = vset.pattern.permute.xlu0 0
      %2354 = vperm.xlu0 %2353, %v2292
      %v2355 = vpop.permute.xlu0 %2354
      %2358 = vset.pattern.permute.xlu0 0
      %2359 = vperm.xlu0 %2358, %v2293
      %v2360 = vpop.permute.xlu0 %2359
      %2363 = vset.pattern.permute.xlu0 0
      %2364 = vperm.xlu0 %2363, %v2294
      %v2365 = vpop.permute.xlu0 %2364
      %2368 = vset.pattern.permute.xlu0 0
      %2369 = vperm.xlu0 %2368, %v2295
      %v2370 = vpop.permute.xlu0 %2369
      %2373 = vset.pattern.permute.xlu0 0
      %2374 = vperm.xlu0 %2373, %v2296
      %v2375 = vpop.permute.xlu0 %2374
      %2378 = vset.pattern.permute.xlu0 0
      %2379 = vperm.xlu0 %2378, %v2297
      %v2380 = vpop.permute.xlu0 %2379
      %v2398 = vunpack.c.l.b16 %v2266
      %v2399 = vunpack.c.l.b16 %v2267
      %v2400 = vunpack.c.l.b16 %v2268
      %v2401 = vunpack.c.l.b16 %v2269
      %v2402 = vunpack.c.l.b16 %v2270
      %v2403 = vunpack.c.l.b16 %v2271
      %v2404 = vunpack.c.l.b16 %v2272
      %v2405 = vunpack.c.l.b16 %v2273
      %v2406 = vunpack.c.l.b16 %v2274
      %v2407 = vunpack.c.l.b16 %v2275
      %v2408 = vunpack.c.l.b16 %v2276
      %v2409 = vunpack.c.l.b16 %v2277
      %v2410 = vunpack.c.l.b16 %v2278
      %v2411 = vunpack.c.l.b16 %v2279
      %v2412 = vunpack.c.l.b16 %v2280
      %v2413 = vunpack.c.l.b16 %v2281
      %v2414 = vpack.c.b16 %v2399, %v2398
      %v2415 = vpack.c.b16 %v2401, %v2400
      %v2416 = vpack.c.b16 %v2403, %v2402
      %v2417 = vpack.c.b16 %v2405, %v2404
      %v2418 = vpack.c.b16 %v2407, %v2406
      %v2419 = vpack.c.b16 %v2409, %v2408
      %v2420 = vpack.c.b16 %v2411, %v2410
      %v2421 = vpack.c.b16 %v2413, %v2412
      %vm2422 = vcmask 523264
      %v2424 = vsel %vm2422, %v2414, 0
      %v2427 = vsel %vm2422, %v2415, 0
      %v2430 = vsel %vm2422, %v2416, 0
      %v2433 = vsel %vm2422, %v2417, 0
      %v2436 = vsel %vm2422, %v2418, 0
      %v2439 = vsel %vm2422, %v2419, 0
      %v2442 = vsel %vm2422, %v2420, 0
      %v2445 = vsel %vm2422, %v2421, 0
      %2447 = vmatprep.subr.bf16.mxu0 0
      %2448 = vmatpush1.bf16.msra.mxu0 %v2298
      %2449 = vmatprep.subr.bf16.mxu0 0
      %2450 = vmatpush1.bf16.msra.mxu0 %v2299
      %2451 = vmatprep.subr.bf16.mxu0 0
      %2452 = vmatpush1.bf16.msra.mxu0 %v2300
      %2453 = vmatprep.subr.bf16.mxu0 0
      %2454 = vmatpush1.bf16.msra.mxu0 %v2301
      %2455 = vmatprep.subr.bf16.mxu0 0
      %2456 = vmatpush1.bf16.msra.mxu0 0
      %2457 = vmatprep.subr.bf16.mxu0 0
      %2458 = vmatpush1.bf16.msra.mxu0 0
      %2459 = vmatprep.subr.bf16.mxu0 0
      %2460 = vmatpush1.bf16.msra.mxu0 0
      %2461 = vmatprep.subr.bf16.mxu0 0
      %2462 = vmatpush1.bf16.msra.mxu0 0
      %2463 = vmatprep.subr.bf16.mxu0 0
      %2464 = vmatpush1.bf16.msra.mxu0 0
      %2465 = vmatprep.subr.bf16.mxu0 0
      %2466 = vmatpush1.bf16.msra.mxu0 0
      %2467 = vmatprep.subr.bf16.mxu0 0
      %2468 = vmatpush1.bf16.msra.mxu0 0
      %2469 = vmatprep.subr.bf16.mxu0 0
      %2470 = vmatpush1.bf16.msra.mxu0 0
      %2471 = vmatprep.subr.bf16.mxu0 0
      %2472 = vmatpush1.bf16.msra.mxu0 0
      %2473 = vmatprep.subr.bf16.mxu0 0
      %2474 = vmatpush1.bf16.msra.mxu0 0
      %2475 = vmatprep.subr.bf16.mxu0 0
      %2476 = vmatpush1.bf16.msra.mxu0 0
      %2477 = vmatprep.subr.bf16.mxu0 0
      %2478 = vmatpush1.bf16.msra.mxu0 0
      %2479 = vmatprep.mubr.bf16.mxu0 0
      %2480 = vmatmul.mubr.bf16.gmra.mrb[0].mxu0 %v2424
      %v2481 = vpop.f32.mrb[0].mxu0
      %v2482 = vadd.f32 %v2305, %v2481
      %v2483 = vpop.f32.mrb[0].mxu0
      %v2484 = vpop.f32.mrb[0].mxu0
      %v2485 = vadd.f32 %v2310, %v2484
      %v2486 = vpop.f32.mrb[0].mxu0
      %2487 = vmatprep.mubr.bf16.mxu0 0
      %2488 = vmatmul.mubr.bf16.gmra.mrb[0].mxu0 %v2427
      %v2489 = vpop.f32.mrb[0].mxu0
      %v2490 = vadd.f32 %v2315, %v2489
      %v2491 = vpop.f32.mrb[0].mxu0
      %v2492 = vpop.f32.mrb[0].mxu0
      %v2493 = vadd.f32 %v2320, %v2492
      %v2494 = vpop.f32.mrb[0].mxu0
      %2495 = vmatprep.mubr.bf16.mxu0 0
      %2496 = vmatmul.mubr.bf16.gmra.mrb[0].mxu0 %v2430
      %v2497 = vpop.f32.mrb[0].mxu0
      %v2498 = vadd.f32 %v2325, %v2497
      %v2499 = vpop.f32.mrb[0].mxu0
      %v2500 = vpop.f32.mrb[0].mxu0
      %v2501 = vadd.f32 %v2330, %v2500
      %v2502 = vpop.f32.mrb[0].mxu0
      %2503 = vmatprep.mubr.bf16.mxu0 0
      %2504 = vmatmul.mubr.bf16.gmra.mrb[0].mxu0 %v2433
      %v2505 = vpop.f32.mrb[0].mxu0
      %v2506 = vadd.f32 %v2335, %v2505
      %v2507 = vpop.f32.mrb[0].mxu0
      %v2508 = vpop.f32.mrb[0].mxu0
      %v2509 = vadd.f32 %v2340, %v2508
      %v2510 = vpop.f32.mrb[0].mxu0
      %2511 = vmatprep.mubr.bf16.mxu0 0
      %2512 = vmatmul.mubr.bf16.gmra.mrb[0].mxu0 %v2436
      %v2513 = vpop.f32.mrb[0].mxu0
      %v2514 = vadd.f32 %v2345, %v2513
      %v2515 = vpop.f32.mrb[0].mxu0
      %v2516 = vpop.f32.mrb[0].mxu0
      %v2517 = vadd.f32 %v2350, %v2516
      %v2518 = vpop.f32.mrb[0].mxu0
      %2519 = vmatprep.mubr.bf16.mxu0 0
      %2520 = vmatmul.mubr.bf16.gmra.mrb[0].mxu0 %v2439
      %v2521 = vpop.f32.mrb[0].mxu0
      %v2522 = vadd.f32 %v2355, %v2521
      %v2523 = vpop.f32.mrb[0].mxu0
      %v2524 = vpop.f32.mrb[0].mxu0
      %v2525 = vadd.f32 %v2360, %v2524
      %v2526 = vpop.f32.mrb[0].mxu0
      %2527 = vmatprep.mubr.bf16.mxu0 0
      %2528 = vmatmul.mubr.bf16.gmra.mrb[0].mxu0 %v2442
      %v2529 = vpop.f32.mrb[0].mxu0
      %v2530 = vadd.f32 %v2365, %v2529
      %v2531 = vpop.f32.mrb[0].mxu0
      %v2532 = vpop.f32.mrb[0].mxu0
      %v2533 = vadd.f32 %v2370, %v2532
      %v2534 = vpop.f32.mrb[0].mxu0
      %2535 = vmatprep.mubr.bf16.mxu0 0
      %2536 = vmatmul.mubr.bf16.gmra.mrb[0].mxu0 %v2445
      %v2537 = vpop.f32.mrb[0].mxu0
      %v2538 = vadd.f32 %v2375, %v2537
      %v2539 = vpop.f32.mrb[0].mxu0
      %v2540 = vpop.f32.mrb[0].mxu0
      %v2541 = vadd.f32 %v2380, %v2540
      %v2542 = vpop.f32.mrb[0].mxu0
      %2543 = vdwg.mxu0
      %vm2544 = vcmask 15360
      %2545 = vst.msk [vmem:[%s461] sm:$0xff] %vm2544, %v2482
      %2546 = vst.msk [vmem:[%s461 + $0x8] sm:$0xff] %vm2544, %v2485
      %2547 = vst.msk [vmem:[%s461 + $0x10] sm:$0xff] %vm2544, %v2490
      %2548 = vst.msk [vmem:[%s461 + $0x18] sm:$0xff] %vm2544, %v2493
      %2549 = vst.msk [vmem:[%s461 + $0x20] sm:$0xff] %vm2544, %v2498
      %2550 = vst.msk [vmem:[%s461 + $0x28] sm:$0xff] %vm2544, %v2501
      %2551 = vst.msk [vmem:[%s461 + $0x30] sm:$0xff] %vm2544, %v2506
      %2552 = vst.msk [vmem:[%s461 + $0x38] sm:$0xff] %vm2544, %v2509
      %2553 = vst.msk [vmem:[%s461 + $0x40] sm:$0xff] %vm2544, %v2514
      %2554 = vst.msk [vmem:[%s461 + $0x48] sm:$0xff] %vm2544, %v2517
      %2555 = vst.msk [vmem:[%s461 + $0x50] sm:$0xff] %vm2544, %v2522
      %2556 = vst.msk [vmem:[%s461 + $0x58] sm:$0xff] %vm2544, %v2525
      %2557 = vst.msk [vmem:[%s461 + $0x60] sm:$0xff] %vm2544, %v2530
      %2558 = vst.msk [vmem:[%s461 + $0x68] sm:$0xff] %vm2544, %v2533
      %2559 = vst.msk [vmem:[%s461 + $0x70] sm:$0xff] %vm2544, %v2538
      %2560 = vst.msk [vmem:[%s461 + $0x78] sm:$0xff] %vm2544, %v2541
      %p2561 = scmp.lt.s32.totalorder %s24, 1
      %s2562 = scalar_select %p2561, %s24, 1
      %p2563 = scmp.lt.s32.totalorder %s23, 0
      %s2564 = scalar_select %p2563, %s23, 0
      %s2565 = smul.addr %s2564, 16
      %s2566 = smul.addr %s2562, 16
      %s2567 = sadd.s32 %s2565, %s2566
      %s2568 = smul.addr %s2567, 8
      %s2569 = scalar_lea.vmem %s8, %s2568
      // Predicated region
      $region53: #{mml_forward.1} parent=51 // pred_check
        %p2570 = pneg %p256
      $region54: #{mml_forward.1} parent=51 // pred_check_branch
        %2572 = sbr.rel (%p2570) target = $region56
      $region55: #{mml_forward.1} parent=51 // pred_region
        _
      $region56: #{mml_forward.1} parent=51 // pred_fallthru
        _
    $region52: #{mml_forward.1} parent=5 // pred_fallthru
      _
    %p2573 = scmp.le.s32.totalorder 2, %s14
    // Predicated region
    $region57: #{mml_forward.1} parent=5 // pred_check
      %p2574 = pneg %p2573
    $region58: #{mml_forward.1} parent=5 // pred_check_branch
      %2576 = sbr.rel (%p2574) target = $region60
    $region59: #{mml_forward.1} parent=5 // pred_region
      %s2577 = ssub.s32 %s14, 2
      // Predicated region
      $region61: #{mml_forward.1} parent=59 // pred_check
        %p2578 = pneg %p262
      $region62: #{mml_forward.1} parent=59 // pred_check_branch
        %2580 = sbr.rel (%p2578) target = $region64
      $region63: #{mml_forward.1} parent=59 // pred_region
        %p2581 = scmp.lt.s32.totalorder %s26, 1
        %s2582 = scalar_select %p2581, %s26, 1
        %p2583 = scmp.lt.s32.totalorder %s25, 0
        %s2584 = scalar_select %p2583, %s25, 0
        %s2585 = smul.addr %s2584, 16
        %s2586 = smul.addr %s2582, 16
        %s2587 = sadd.s32 %s2585, %s2586
        %s2588 = smul.addr %s2587, 8
        %s2589 = scalar_lea.vmem %s8, %s2588
      $region64: #{mml_forward.1} parent=59 // pred_fallthru
        _
    $region60: #{mml_forward.1} parent=5 // pred_fallthru
      _
  $region6: #{mml_forward.1} parent=0 // loop_footer
    %s18 = sadd.s32 1, %s14
  $region7: #{mml_forward.1} parent=0 // loop_footer_branch
    %13 = sbr.rel target = $region3
  $region8: #{mml_forward.1} parent=0 // loop_exit
    _

</llo_original>
